<compile_context>
chip_gen: v7x
topology: tpu7x:2x2x1
jax: 0.10.0
libtpu: 0.0.40
codegen_flags: <defaults>
</compile_context>

<pallas_src>
import jax
import jax.numpy as jnp
from jax import lax
from jax.experimental import pallas as pl
from jax.experimental.pallas import tpu as pltpu

# ---------------- static problem configuration (small, synthetic) -----------
B = 2
H = W = 16
HW = H * W                 # 256
L = B * HW                 # 512 -> lane axis after batch stacking
NIN = 32
NOUT = 32                  # residual add requires nIn == nOut
N = NOUT // 4              # channels per branch = 8 (one sublane tile)
RED = 16
HIDDEN = NOUT // RED       # 2
EPS = 1e-3
DIL = (1, 2, 3, 4)         # F_loc, F_sur1(2*d), F_sur2(3*d), F_sur3(4*d), d=1
NTAP = len(DIL) * 9        # 36


# ---------------- the Pallas kernel ------------------------------------------
def _cg_block_kernel(x_ref, w1_ref, c1_ref, wtap_ref, p32_ref, fc1b_ref,
                     out_ref):
    # x_ref    : (NIN, L)        batch stacked along lanes
    # w1_ref   : (N, NIN)        1x1 conv weight with BN scale s1 folded in
    # c1_ref   : (N, 2)          [b1, prelu_alpha1]
    # wtap_ref : (NTAP, N, L)    masked, s2-folded, batch-tiled tap weights
    # p32_ref  : (NOUT, 7)       [b2, alpha2, fc1_w.T, fc2_w, fc2_b]
    # fc1b_ref : (1, HIDDEN)
    # out_ref  : (NOUT, L)

    # --- ConvBNPReLU: 1x1 conv (MXU) -> +bias -> PReLU ------------------------
    z = jnp.dot(w1_ref[...], x_ref[...], preferred_element_type=jnp.float32)
    z = z + c1_ref[:, 0:1]
    z = jnp.where(z > 0, z, c1_ref[:, 1:2] * z)                  # (N, L)

    # --- F_loc / F_sur1..3: channel-wise dilated 3x3 convs --------------------
    # Each tap is roll (XLU) + load plane + multiply-add; masks & BN scale are
    # already baked into wtap on the host.
    branches = []
    for i, d in enumerate(DIL):
        acc = jnp.zeros((N, L), jnp.float32)
        for k in range(9):
            dy = (k // 3 - 1) * d
            dx = (k % 3 - 1) * d
            shift = (-(dy * W + dx)) % L
            tap = pltpu.roll(z, shift, axis=1) if shift else z
            acc = acc + tap * wtap_ref[i * 9 + k]
        branches.append(acc)
    joi = jnp.concatenate(branches, axis=0)                      # (NOUT, L)

    # --- BNPReLU on the joint feature (scale folded, only +bias + PReLU) ------
    joi = joi + p32_ref[:, 0:1]
    joi = jnp.where(joi > 0, joi, p32_ref[:, 1:2] * joi)

    # --- FGlo (per image) + residual add ---------------------------------------
    fc1_wt = p32_ref[:, 2:2 + HIDDEN]                            # (NOUT, HIDDEN)
    fc2_w = p32_ref[:, 2 + HIDDEN:2 + 2 * HIDDEN]                # (NOUT, HIDDEN)
    fc2_b = p32_ref[:, 2 + 2 * HIDDEN:3 + 2 * HIDDEN]            # (NOUT, 1)
    fc1_b = fc1b_ref[...]                                        # (1, HIDDEN)
    for img in range(B):
        lo = img * HW                                            # 128-aligned
        joi_i = joi[:, lo:lo + HW]                               # (NOUT, HW)
        ymean = jnp.sum(joi_i, axis=1, keepdims=True) * (1.0 / HW)
        h = jnp.sum(fc1_wt * ymean, axis=0, keepdims=True) + fc1_b
        h = jnp.maximum(h, 0.0)
        g = jnp.sum(fc2_w * h, axis=1, keepdims=True) + fc2_b
        g = jax.nn.sigmoid(g)                                    # (NOUT, 1)
        # re-read x here (short live range) and write a lane-dense slab
        out_ref[:, lo:lo + HW] = x_ref[:, lo:lo + HW] + joi_i * g


# ---------------- wrapper -----------------------------------------------------
def context_guided_block(x_nchw, p):
    b, c, h, w = x_nchw.shape
    assert (b, c, h, w) == (B, NIN, H, W)
    # batch-stack along the lane axis: (B, C, H, W) -> (C, B*HW)
    x_cl = x_nchw.reshape(b, c, h * w).transpose(1, 0, 2).reshape(c, b * h * w)

    out_cl = pl.pallas_call(
        _cg_block_kernel,
        out_shape=jax.ShapeDtypeStruct((NOUT, L), jnp.float32),
    )(x_cl, p["w1"], p["c1"], p["wtap"], p["p32"], p["fc1b"])

    return out_cl.reshape(NOUT, b, h * w).transpose(1, 0, 2).reshape(b, NOUT, h, w)


# ---------------- host-side parameter folding / packing -----------------------
def fold_bn(gamma, beta, mean, var):
    scale = gamma / jnp.sqrt(var + EPS)
    return scale, beta - mean * scale


def pack_params(w1, g1, be1, m1, v1, a1, wdw, g2, be2, m2, v2, a2,
                fc1_w, fc1_b, fc2_w, fc2_b):
    s1, b1 = fold_bn(g1, be1, m1, v1)
    s2, b2 = fold_bn(g2, be2, m2, v2)

    # fold the 1x1-conv branch BN scale into the conv weight
    w1f = w1 * s1[:, None]                                       # (N, NIN)
    c1 = jnp.stack([b1, a1], axis=1)                             # (N, 2)

    # masked, s2-folded, broadcast, batch-tiled depthwise tap weight planes
    row = jnp.arange(HW) // W
    col = jnp.arange(HW) % W
    planes = []
    for i, d in enumerate(DIL):
        s2_branch = s2[i * N:(i + 1) * N]                        # (N,)
        for k in range(9):
            dy = (k // 3 - 1) * d
            dx = (k % 3 - 1) * d
            valid = ((row + dy >= 0) & (row + dy < H) &
                     (col + dx >= 0) & (col + dx < W)).astype(jnp.float32)
            wcol = wdw[i][:, k // 3, k % 3] * s2_branch          # (N,)
            planes.append(wcol[:, None] * valid[None, :])        # (N, HW)
    wtap = jnp.stack(planes, axis=0)                             # (NTAP, N, HW)
    wtap = jnp.tile(wtap, (1, 1, B))                             # (NTAP, N, L)

    p32 = jnp.concatenate(
        [b2[:, None], a2[:, None], fc1_w.T, fc2_w, fc2_b[:, None]],
        axis=1)                                                  # (NOUT, 7)

    return dict(w1=w1f, c1=c1, wtap=wtap, p32=p32,
                fc1b=fc1_b.reshape(1, HIDDEN))


# ---------------- pure-JAX reference (NCHW, matches PyTorch semantics) --------
def ref_forward(x, w1, s1, b1, a1, wdw, s2, b2, a2, fc1_w, fc1_b, fc2_w, fc2_b):
    dn = ("NCHW", "OIHW", "NCHW")
    hp = lax.Precision.HIGHEST
    y = lax.conv_general_dilated(x, w1[:, :, None, None], (1, 1),
                                 ((0, 0), (0, 0)), dimension_numbers=dn,
                                 precision=hp)
    y = y * s1[None, :, None, None] + b1[None, :, None, None]
    y = jnp.where(y > 0, y, a1[None, :, None, None] * y)
    branches = []
    for w, d in zip(wdw, DIL):
        o = lax.conv_general_dilated(y, w[:, None, :, :], (1, 1),
                                     ((d, d), (d, d)), rhs_dilation=(d, d),
                                     dimension_numbers=dn,
                                     feature_group_count=N, precision=hp)
        branches.append(o)
    joi = jnp.concatenate(branches, axis=1)
    joi = joi * s2[None, :, None, None] + b2[None, :, None, None]
    joi = jnp.where(joi > 0, joi, a2[None, :, None, None] * joi)
    ymean = jnp.mean(joi, axis=(2, 3))
    h = jax.nn.relu(ymean @ fc1_w.T + fc1_b)
    g = jax.nn.sigmoid(h @ fc2_w.T + fc2_b)
    return x + joi * g[:, :, None, None]


# ---------------- main --------------------------------------------------------
if __name__ == "__main__":
    key = jax.random.PRNGKey(0)
    ks = jax.random.split(key, 24)
    x = jax.random.normal(ks[0], (B, NIN, H, W), jnp.float32)

    # deterministic synthetic parameters (torch layouts)
    w1 = 0.2 * jax.random.normal(ks[1], (N, NIN), jnp.float32)     # Conv2d 1x1
    g1 = 1.0 + 0.1 * jax.random.normal(ks[2], (N,), jnp.float32)
    be1 = 0.1 * jax.random.normal(ks[3], (N,), jnp.float32)
    m1 = 0.1 * jax.random.normal(ks[4], (N,), jnp.float32)
    v1 = 0.5 + jnp.abs(jax.random.normal(ks[5], (N,), jnp.float32))
    a1 = jnp.full((N,), 0.25, jnp.float32)                         # PReLU init

    wdw = [0.3 * jax.random.normal(ks[6 + i], (N, 3, 3), jnp.float32)
           for i in range(4)]                                      # depthwise

    g2 = 1.0 + 0.1 * jax.random.normal(ks[10], (NOUT,), jnp.float32)
    be2 = 0.1 * jax.random.normal(ks[11], (NOUT,), jnp.float32)
    m2 = 0.1 * jax.random.normal(ks[12], (NOUT,), jnp.float32)
    v2 = 0.5 + jnp.abs(jax.random.normal(ks[13], (NOUT,), jnp.float32))
    a2 = jnp.full((NOUT,), 0.25, jnp.float32)

    fc1_w = 0.3 * jax.random.normal(ks[14], (HIDDEN, NOUT), jnp.float32)
    fc1_b = 0.1 * jax.random.normal(ks[15], (HIDDEN,), jnp.float32)
    fc2_w = 0.3 * jax.random.normal(ks[16], (NOUT, HIDDEN), jnp.float32)
    fc2_b = 0.1 * jax.random.normal(ks[17], (NOUT,), jnp.float32)

    params = pack_params(w1, g1, be1, m1, v1, a1, wdw, g2, be2, m2, v2, a2,
                         fc1_w, fc1_b, fc2_w, fc2_b)

    out = context_guided_block(x, params)
    out = jax.block_until_ready(out)

    s1, b1 = fold_bn(g1, be1, m1, v1)
    s2, b2 = fold_bn(g2, be2, m2, v2)
    ref = ref_forward(x, w1, s1, b1, a1, wdw, s2, b2, a2,
                      fc1_w, fc1_b, fc2_w, fc2_b)
    err = float(jnp.max(jnp.abs(out - ref)))
    assert jnp.allclose(out, ref, atol=1e-2, rtol=1e-2), f"max abs err {err}"
    print("KERNEL_OK")
</pallas_src>

<mosaic_0001>
module attributes {stable_mosaic.version = 11 : i64} {
  func.func @_cg_block_kernel(%arg0: memref<32x512xf32, #tpu.memory_space<vmem>>, %arg1: memref<8x32xf32, #tpu.memory_space<vmem>>, %arg2: memref<8x2xf32, #tpu.memory_space<vmem>>, %arg3: memref<36x8x512xf32, #tpu.memory_space<vmem>>, %arg4: memref<32x7xf32, #tpu.memory_space<vmem>>, %arg5: memref<1x2xf32, #tpu.memory_space<vmem>>, %arg6: memref<32x512xf32, #tpu.memory_space<vmem>>) attributes {dimension_semantics = [], scalar_prefetch = 0 : i64, scratch_operands = 0 : i64, tpu.core_type = #tpu.core_type<tc>} {
    %c0 = arith.constant 0 : index
    %c0_0 = arith.constant 0 : index
    %0 = vector.load %arg1[%c0, %c0_0] : memref<8x32xf32, #tpu.memory_space<vmem>>, vector<8x32xf32>
    %c0_1 = arith.constant 0 : index
    %c0_2 = arith.constant 0 : index
    %1 = vector.load %arg0[%c0_1, %c0_2] : memref<32x512xf32, #tpu.memory_space<vmem>>, vector<32x512xf32>
    %cst = arith.constant dense<0.000000e+00> : vector<8x512xf32>
    %2 = tpu.matmul %0, %1, %cst {dimension_numbers = #tpu.dot_dimension_numbers<[1], [0], [0], [1], [0, 0, 1, 1], [], []>} : vector<8x32xf32>, vector<32x512xf32>, vector<8x512xf32> -> vector<8x512xf32>
    %c0_3 = arith.constant 0 : index
    %c0_4 = arith.constant 0 : index
    %3 = vector.load %arg2[%c0_3, %c0_4] : memref<8x2xf32, #tpu.memory_space<vmem>>, vector<8x1xf32>
    %4 = vector.broadcast %3 : vector<8x1xf32> to vector<8x512xf32>
    %5 = arith.addf %2, %4 : vector<8x512xf32>
    %cst_5 = arith.constant 0.000000e+00 : f32
    %6 = vector.broadcast %cst_5 : f32 to vector<8x512xf32>
    %7 = arith.cmpf ogt, %5, %6 : vector<8x512xf32>
    %c0_6 = arith.constant 0 : index
    %c1 = arith.constant 1 : index
    %8 = vector.load %arg2[%c0_6, %c1] : memref<8x2xf32, #tpu.memory_space<vmem>>, vector<8x1xf32>
    %9 = vector.broadcast %8 : vector<8x1xf32> to vector<8x512xf32>
    %10 = arith.mulf %9, %5 : vector<8x512xf32>
    %11 = arith.select %7, %5, %10 : vector<8x512xi1>, vector<8x512xf32>
    %cst_7 = arith.constant 0.000000e+00 : f32
    %12 = vector.broadcast %cst_7 : f32 to vector<8x512xf32>
    %c17_i32 = arith.constant 17 : i32
    %13 = tpu.dynamic_rotate %11 by %c17_i32 dim 1 : vector<8x512xf32>, i32 -> vector<8x512xf32>
    %c0_8 = arith.constant 0 : index
    %c0_9 = arith.constant 0 : index
    %c0_10 = arith.constant 0 : index
    %14 = vector.load %arg3[%c0_8, %c0_9, %c0_10] : memref<36x8x512xf32, #tpu.memory_space<vmem>>, vector<1x8x512xf32>
    %15 = vector.shape_cast %14 : vector<1x8x512xf32> to vector<8x512xf32>
    %16 = arith.mulf %13, %15 : vector<8x512xf32>
    %17 = arith.addf %12, %16 : vector<8x512xf32>
    %c16_i32 = arith.constant 16 : i32
    %18 = tpu.dynamic_rotate %11 by %c16_i32 dim 1 : vector<8x512xf32>, i32 -> vector<8x512xf32>
    %c1_11 = arith.constant 1 : index
    %c0_12 = arith.constant 0 : index
    %c0_13 = arith.constant 0 : index
    %19 = vector.load %arg3[%c1_11, %c0_12, %c0_13] : memref<36x8x512xf32, #tpu.memory_space<vmem>>, vector<1x8x512xf32>
    %20 = vector.shape_cast %19 : vector<1x8x512xf32> to vector<8x512xf32>
    %21 = arith.mulf %18, %20 : vector<8x512xf32>
    %22 = arith.addf %17, %21 : vector<8x512xf32>
    %c15_i32 = arith.constant 15 : i32
    %23 = tpu.dynamic_rotate %11 by %c15_i32 dim 1 : vector<8x512xf32>, i32 -> vector<8x512xf32>
    %c2 = arith.constant 2 : index
    %c0_14 = arith.constant 0 : index
    %c0_15 = arith.constant 0 : index
    %24 = vector.load %arg3[%c2, %c0_14, %c0_15] : memref<36x8x512xf32, #tpu.memory_space<vmem>>, vector<1x8x512xf32>
    %25 = vector.shape_cast %24 : vector<1x8x512xf32> to vector<8x512xf32>
    %26 = arith.mulf %23, %25 : vector<8x512xf32>
    %27 = arith.addf %22, %26 : vector<8x512xf32>
    %c1_i32 = arith.constant 1 : i32
    %28 = tpu.dynamic_rotate %11 by %c1_i32 dim 1 : vector<8x512xf32>, i32 -> vector<8x512xf32>
    %c3 = arith.constant 3 : index
    %c0_16 = arith.constant 0 : index
    %c0_17 = arith.constant 0 : index
    %29 = vector.load %arg3[%c3, %c0_16, %c0_17] : memref<36x8x512xf32, #tpu.memory_space<vmem>>, vector<1x8x512xf32>
    %30 = vector.shape_cast %29 : vector<1x8x512xf32> to vector<8x512xf32>
    %31 = arith.mulf %28, %30 : vector<8x512xf32>
    %32 = arith.addf %27, %31 : vector<8x512xf32>
    %c4 = arith.constant 4 : index
    %c0_18 = arith.constant 0 : index
    %c0_19 = arith.constant 0 : index
    %33 = vector.load %arg3[%c4, %c0_18, %c0_19] : memref<36x8x512xf32, #tpu.memory_space<vmem>>, vector<1x8x512xf32>
    %34 = vector.shape_cast %33 : vector<1x8x512xf32> to vector<8x512xf32>
    %35 = arith.mulf %11, %34 : vector<8x512xf32>
    %36 = arith.addf %32, %35 : vector<8x512xf32>
    %c511_i32 = arith.constant 511 : i32
    %37 = tpu.dynamic_rotate %11 by %c511_i32 dim 1 : vector<8x512xf32>, i32 -> vector<8x512xf32>
    %c5 = arith.constant 5 : index
    %c0_20 = arith.constant 0 : index
    %c0_21 = arith.constant 0 : index
    %38 = vector.load %arg3[%c5, %c0_20, %c0_21] : memref<36x8x512xf32, #tpu.memory_space<vmem>>, vector<1x8x512xf32>
    %39 = vector.shape_cast %38 : vector<1x8x512xf32> to vector<8x512xf32>
    %40 = arith.mulf %37, %39 : vector<8x512xf32>
    %41 = arith.addf %36, %40 : vector<8x512xf32>
    %c497_i32 = arith.constant 497 : i32
    %42 = tpu.dynamic_rotate %11 by %c497_i32 dim 1 : vector<8x512xf32>, i32 -> vector<8x512xf32>
    %c6 = arith.constant 6 : index
    %c0_22 = arith.constant 0 : index
    %c0_23 = arith.constant 0 : index
    %43 = vector.load %arg3[%c6, %c0_22, %c0_23] : memref<36x8x512xf32, #tpu.memory_space<vmem>>, vector<1x8x512xf32>
    %44 = vector.shape_cast %43 : vector<1x8x512xf32> to vector<8x512xf32>
    %45 = arith.mulf %42, %44 : vector<8x512xf32>
    %46 = arith.addf %41, %45 : vector<8x512xf32>
    %c496_i32 = arith.constant 496 : i32
    %47 = tpu.dynamic_rotate %11 by %c496_i32 dim 1 : vector<8x512xf32>, i32 -> vector<8x512xf32>
    %c7 = arith.constant 7 : index
    %c0_24 = arith.constant 0 : index
    %c0_25 = arith.constant 0 : index
    %48 = vector.load %arg3[%c7, %c0_24, %c0_25] : memref<36x8x512xf32, #tpu.memory_space<vmem>>, vector<1x8x512xf32>
    %49 = vector.shape_cast %48 : vector<1x8x512xf32> to vector<8x512xf32>
    %50 = arith.mulf %47, %49 : vector<8x512xf32>
    %51 = arith.addf %46, %50 : vector<8x512xf32>
    %c495_i32 = arith.constant 495 : i32
    %52 = tpu.dynamic_rotate %11 by %c495_i32 dim 1 : vector<8x512xf32>, i32 -> vector<8x512xf32>
    %c8 = arith.constant 8 : index
    %c0_26 = arith.constant 0 : index
    %c0_27 = arith.constant 0 : index
    %53 = vector.load %arg3[%c8, %c0_26, %c0_27] : memref<36x8x512xf32, #tpu.memory_space<vmem>>, vector<1x8x512xf32>
    %54 = vector.shape_cast %53 : vector<1x8x512xf32> to vector<8x512xf32>
    %55 = arith.mulf %52, %54 : vector<8x512xf32>
    %56 = arith.addf %51, %55 : vector<8x512xf32>
    %cst_28 = arith.constant 0.000000e+00 : f32
    %57 = vector.broadcast %cst_28 : f32 to vector<8x512xf32>
    %c34_i32 = arith.constant 34 : i32
    %58 = tpu.dynamic_rotate %11 by %c34_i32 dim 1 : vector<8x512xf32>, i32 -> vector<8x512xf32>
    %c9 = arith.constant 9 : index
    %c0_29 = arith.constant 0 : index
    %c0_30 = arith.constant 0 : index
    %59 = vector.load %arg3[%c9, %c0_29, %c0_30] : memref<36x8x512xf32, #tpu.memory_space<vmem>>, vector<1x8x512xf32>
    %60 = vector.shape_cast %59 : vector<1x8x512xf32> to vector<8x512xf32>
    %61 = arith.mulf %58, %60 : vector<8x512xf32>
    %62 = arith.addf %57, %61 : vector<8x512xf32>
    %c32_i32 = arith.constant 32 : i32
    %63 = tpu.dynamic_rotate %11 by %c32_i32 dim 1 : vector<8x512xf32>, i32 -> vector<8x512xf32>
    %c10 = arith.constant 10 : index
    %c0_31 = arith.constant 0 : index
    %c0_32 = arith.constant 0 : index
    %64 = vector.load %arg3[%c10, %c0_31, %c0_32] : memref<36x8x512xf32, #tpu.memory_space<vmem>>, vector<1x8x512xf32>
    %65 = vector.shape_cast %64 : vector<1x8x512xf32> to vector<8x512xf32>
    %66 = arith.mulf %63, %65 : vector<8x512xf32>
    %67 = arith.addf %62, %66 : vector<8x512xf32>
    %c30_i32 = arith.constant 30 : i32
    %68 = tpu.dynamic_rotate %11 by %c30_i32 dim 1 : vector<8x512xf32>, i32 -> vector<8x512xf32>
    %c11 = arith.constant 11 : index
    %c0_33 = arith.constant 0 : index
    %c0_34 = arith.constant 0 : index
    %69 = vector.load %arg3[%c11, %c0_33, %c0_34] : memref<36x8x512xf32, #tpu.memory_space<vmem>>, vector<1x8x512xf32>
    %70 = vector.shape_cast %69 : vector<1x8x512xf32> to vector<8x512xf32>
    %71 = arith.mulf %68, %70 : vector<8x512xf32>
    %72 = arith.addf %67, %71 : vector<8x512xf32>
    %c2_i32 = arith.constant 2 : i32
    %73 = tpu.dynamic_rotate %11 by %c2_i32 dim 1 : vector<8x512xf32>, i32 -> vector<8x512xf32>
    %c12 = arith.constant 12 : index
    %c0_35 = arith.constant 0 : index
    %c0_36 = arith.constant 0 : index
    %74 = vector.load %arg3[%c12, %c0_35, %c0_36] : memref<36x8x512xf32, #tpu.memory_space<vmem>>, vector<1x8x512xf32>
    %75 = vector.shape_cast %74 : vector<1x8x512xf32> to vector<8x512xf32>
    %76 = arith.mulf %73, %75 : vector<8x512xf32>
    %77 = arith.addf %72, %76 : vector<8x512xf32>
    %c13 = arith.constant 13 : index
    %c0_37 = arith.constant 0 : index
    %c0_38 = arith.constant 0 : index
    %78 = vector.load %arg3[%c13, %c0_37, %c0_38] : memref<36x8x512xf32, #tpu.memory_space<vmem>>, vector<1x8x512xf32>
    %79 = vector.shape_cast %78 : vector<1x8x512xf32> to vector<8x512xf32>
    %80 = arith.mulf %11, %79 : vector<8x512xf32>
    %81 = arith.addf %77, %80 : vector<8x512xf32>
    %c510_i32 = arith.constant 510 : i32
    %82 = tpu.dynamic_rotate %11 by %c510_i32 dim 1 : vector<8x512xf32>, i32 -> vector<8x512xf32>
    %c14 = arith.constant 14 : index
    %c0_39 = arith.constant 0 : index
    %c0_40 = arith.constant 0 : index
    %83 = vector.load %arg3[%c14, %c0_39, %c0_40] : memref<36x8x512xf32, #tpu.memory_space<vmem>>, vector<1x8x512xf32>
    %84 = vector.shape_cast %83 : vector<1x8x512xf32> to vector<8x512xf32>
    %85 = arith.mulf %82, %84 : vector<8x512xf32>
    %86 = arith.addf %81, %85 : vector<8x512xf32>
    %c482_i32 = arith.constant 482 : i32
    %87 = tpu.dynamic_rotate %11 by %c482_i32 dim 1 : vector<8x512xf32>, i32 -> vector<8x512xf32>
    %c15 = arith.constant 15 : index
    %c0_41 = arith.constant 0 : index
    %c0_42 = arith.constant 0 : index
    %88 = vector.load %arg3[%c15, %c0_41, %c0_42] : memref<36x8x512xf32, #tpu.memory_space<vmem>>, vector<1x8x512xf32>
    %89 = vector.shape_cast %88 : vector<1x8x512xf32> to vector<8x512xf32>
    %90 = arith.mulf %87, %89 : vector<8x512xf32>
    %91 = arith.addf %86, %90 : vector<8x512xf32>
    %c480_i32 = arith.constant 480 : i32
    %92 = tpu.dynamic_rotate %11 by %c480_i32 dim 1 : vector<8x512xf32>, i32 -> vector<8x512xf32>
    %c16 = arith.constant 16 : index
    %c0_43 = arith.constant 0 : index
    %c0_44 = arith.constant 0 : index
    %93 = vector.load %arg3[%c16, %c0_43, %c0_44] : memref<36x8x512xf32, #tpu.memory_space<vmem>>, vector<1x8x512xf32>
    %94 = vector.shape_cast %93 : vector<1x8x512xf32> to vector<8x512xf32>
    %95 = arith.mulf %92, %94 : vector<8x512xf32>
    %96 = arith.addf %91, %95 : vector<8x512xf32>
    %c478_i32 = arith.constant 478 : i32
    %97 = tpu.dynamic_rotate %11 by %c478_i32 dim 1 : vector<8x512xf32>, i32 -> vector<8x512xf32>
    %c17 = arith.constant 17 : index
    %c0_45 = arith.constant 0 : index
    %c0_46 = arith.constant 0 : index
    %98 = vector.load %arg3[%c17, %c0_45, %c0_46] : memref<36x8x512xf32, #tpu.memory_space<vmem>>, vector<1x8x512xf32>
    %99 = vector.shape_cast %98 : vector<1x8x512xf32> to vector<8x512xf32>
    %100 = arith.mulf %97, %99 : vector<8x512xf32>
    %101 = arith.addf %96, %100 : vector<8x512xf32>
    %cst_47 = arith.constant 0.000000e+00 : f32
    %102 = vector.broadcast %cst_47 : f32 to vector<8x512xf32>
    %c51_i32 = arith.constant 51 : i32
    %103 = tpu.dynamic_rotate %11 by %c51_i32 dim 1 : vector<8x512xf32>, i32 -> vector<8x512xf32>
    %c18 = arith.constant 18 : index
    %c0_48 = arith.constant 0 : index
    %c0_49 = arith.constant 0 : index
    %104 = vector.load %arg3[%c18, %c0_48, %c0_49] : memref<36x8x512xf32, #tpu.memory_space<vmem>>, vector<1x8x512xf32>
    %105 = vector.shape_cast %104 : vector<1x8x512xf32> to vector<8x512xf32>
    %106 = arith.mulf %103, %105 : vector<8x512xf32>
    %107 = arith.addf %102, %106 : vector<8x512xf32>
    %c48_i32 = arith.constant 48 : i32
    %108 = tpu.dynamic_rotate %11 by %c48_i32 dim 1 : vector<8x512xf32>, i32 -> vector<8x512xf32>
    %c19 = arith.constant 19 : index
    %c0_50 = arith.constant 0 : index
    %c0_51 = arith.constant 0 : index
    %109 = vector.load %arg3[%c19, %c0_50, %c0_51] : memref<36x8x512xf32, #tpu.memory_space<vmem>>, vector<1x8x512xf32>
    %110 = vector.shape_cast %109 : vector<1x8x512xf32> to vector<8x512xf32>
    %111 = arith.mulf %108, %110 : vector<8x512xf32>
    %112 = arith.addf %107, %111 : vector<8x512xf32>
    %c45_i32 = arith.constant 45 : i32
    %113 = tpu.dynamic_rotate %11 by %c45_i32 dim 1 : vector<8x512xf32>, i32 -> vector<8x512xf32>
    %c20 = arith.constant 20 : index
    %c0_52 = arith.constant 0 : index
    %c0_53 = arith.constant 0 : index
    %114 = vector.load %arg3[%c20, %c0_52, %c0_53] : memref<36x8x512xf32, #tpu.memory_space<vmem>>, vector<1x8x512xf32>
    %115 = vector.shape_cast %114 : vector<1x8x512xf32> to vector<8x512xf32>
    %116 = arith.mulf %113, %115 : vector<8x512xf32>
    %117 = arith.addf %112, %116 : vector<8x512xf32>
    %c3_i32 = arith.constant 3 : i32
    %118 = tpu.dynamic_rotate %11 by %c3_i32 dim 1 : vector<8x512xf32>, i32 -> vector<8x512xf32>
    %c21 = arith.constant 21 : index
    %c0_54 = arith.constant 0 : index
    %c0_55 = arith.constant 0 : index
    %119 = vector.load %arg3[%c21, %c0_54, %c0_55] : memref<36x8x512xf32, #tpu.memory_space<vmem>>, vector<1x8x512xf32>
    %120 = vector.shape_cast %119 : vector<1x8x512xf32> to vector<8x512xf32>
    %121 = arith.mulf %118, %120 : vector<8x512xf32>
    %122 = arith.addf %117, %121 : vector<8x512xf32>
    %c22 = arith.constant 22 : index
    %c0_56 = arith.constant 0 : index
    %c0_57 = arith.constant 0 : index
    %123 = vector.load %arg3[%c22, %c0_56, %c0_57] : memref<36x8x512xf32, #tpu.memory_space<vmem>>, vector<1x8x512xf32>
    %124 = vector.shape_cast %123 : vector<1x8x512xf32> to vector<8x512xf32>
    %125 = arith.mulf %11, %124 : vector<8x512xf32>
    %126 = arith.addf %122, %125 : vector<8x512xf32>
    %c509_i32 = arith.constant 509 : i32
    %127 = tpu.dynamic_rotate %11 by %c509_i32 dim 1 : vector<8x512xf32>, i32 -> vector<8x512xf32>
    %c23 = arith.constant 23 : index
    %c0_58 = arith.constant 0 : index
    %c0_59 = arith.constant 0 : index
    %128 = vector.load %arg3[%c23, %c0_58, %c0_59] : memref<36x8x512xf32, #tpu.memory_space<vmem>>, vector<1x8x512xf32>
    %129 = vector.shape_cast %128 : vector<1x8x512xf32> to vector<8x512xf32>
    %130 = arith.mulf %127, %129 : vector<8x512xf32>
    %131 = arith.addf %126, %130 : vector<8x512xf32>
    %c467_i32 = arith.constant 467 : i32
    %132 = tpu.dynamic_rotate %11 by %c467_i32 dim 1 : vector<8x512xf32>, i32 -> vector<8x512xf32>
    %c24 = arith.constant 24 : index
    %c0_60 = arith.constant 0 : index
    %c0_61 = arith.constant 0 : index
    %133 = vector.load %arg3[%c24, %c0_60, %c0_61] : memref<36x8x512xf32, #tpu.memory_space<vmem>>, vector<1x8x512xf32>
    %134 = vector.shape_cast %133 : vector<1x8x512xf32> to vector<8x512xf32>
    %135 = arith.mulf %132, %134 : vector<8x512xf32>
    %136 = arith.addf %131, %135 : vector<8x512xf32>
    %c464_i32 = arith.constant 464 : i32
    %137 = tpu.dynamic_rotate %11 by %c464_i32 dim 1 : vector<8x512xf32>, i32 -> vector<8x512xf32>
    %c25 = arith.constant 25 : index
    %c0_62 = arith.constant 0 : index
    %c0_63 = arith.constant 0 : index
    %138 = vector.load %arg3[%c25, %c0_62, %c0_63] : memref<36x8x512xf32, #tpu.memory_space<vmem>>, vector<1x8x512xf32>
    %139 = vector.shape_cast %138 : vector<1x8x512xf32> to vector<8x512xf32>
    %140 = arith.mulf %137, %139 : vector<8x512xf32>
    %141 = arith.addf %136, %140 : vector<8x512xf32>
    %c461_i32 = arith.constant 461 : i32
    %142 = tpu.dynamic_rotate %11 by %c461_i32 dim 1 : vector<8x512xf32>, i32 -> vector<8x512xf32>
    %c26 = arith.constant 26 : index
    %c0_64 = arith.constant 0 : index
    %c0_65 = arith.constant 0 : index
    %143 = vector.load %arg3[%c26, %c0_64, %c0_65] : memref<36x8x512xf32, #tpu.memory_space<vmem>>, vector<1x8x512xf32>
    %144 = vector.shape_cast %143 : vector<1x8x512xf32> to vector<8x512xf32>
    %145 = arith.mulf %142, %144 : vector<8x512xf32>
    %146 = arith.addf %141, %145 : vector<8x512xf32>
    %cst_66 = arith.constant 0.000000e+00 : f32
    %147 = vector.broadcast %cst_66 : f32 to vector<8x512xf32>
    %c68_i32 = arith.constant 68 : i32
    %148 = tpu.dynamic_rotate %11 by %c68_i32 dim 1 : vector<8x512xf32>, i32 -> vector<8x512xf32>
    %c27 = arith.constant 27 : index
    %c0_67 = arith.constant 0 : index
    %c0_68 = arith.constant 0 : index
    %149 = vector.load %arg3[%c27, %c0_67, %c0_68] : memref<36x8x512xf32, #tpu.memory_space<vmem>>, vector<1x8x512xf32>
    %150 = vector.shape_cast %149 : vector<1x8x512xf32> to vector<8x512xf32>
    %151 = arith.mulf %148, %150 : vector<8x512xf32>
    %152 = arith.addf %147, %151 : vector<8x512xf32>
    %c64_i32 = arith.constant 64 : i32
    %153 = tpu.dynamic_rotate %11 by %c64_i32 dim 1 : vector<8x512xf32>, i32 -> vector<8x512xf32>
    %c28 = arith.constant 28 : index
    %c0_69 = arith.constant 0 : index
    %c0_70 = arith.constant 0 : index
    %154 = vector.load %arg3[%c28, %c0_69, %c0_70] : memref<36x8x512xf32, #tpu.memory_space<vmem>>, vector<1x8x512xf32>
    %155 = vector.shape_cast %154 : vector<1x8x512xf32> to vector<8x512xf32>
    %156 = arith.mulf %153, %155 : vector<8x512xf32>
    %157 = arith.addf %152, %156 : vector<8x512xf32>
    %c60_i32 = arith.constant 60 : i32
    %158 = tpu.dynamic_rotate %11 by %c60_i32 dim 1 : vector<8x512xf32>, i32 -> vector<8x512xf32>
    %c29 = arith.constant 29 : index
    %c0_71 = arith.constant 0 : index
    %c0_72 = arith.constant 0 : index
    %159 = vector.load %arg3[%c29, %c0_71, %c0_72] : memref<36x8x512xf32, #tpu.memory_space<vmem>>, vector<1x8x512xf32>
    %160 = vector.shape_cast %159 : vector<1x8x512xf32> to vector<8x512xf32>
    %161 = arith.mulf %158, %160 : vector<8x512xf32>
    %162 = arith.addf %157, %161 : vector<8x512xf32>
    %c4_i32 = arith.constant 4 : i32
    %163 = tpu.dynamic_rotate %11 by %c4_i32 dim 1 : vector<8x512xf32>, i32 -> vector<8x512xf32>
    %c30 = arith.constant 30 : index
    %c0_73 = arith.constant 0 : index
    %c0_74 = arith.constant 0 : index
    %164 = vector.load %arg3[%c30, %c0_73, %c0_74] : memref<36x8x512xf32, #tpu.memory_space<vmem>>, vector<1x8x512xf32>
    %165 = vector.shape_cast %164 : vector<1x8x512xf32> to vector<8x512xf32>
    %166 = arith.mulf %163, %165 : vector<8x512xf32>
    %167 = arith.addf %162, %166 : vector<8x512xf32>
    %c31 = arith.constant 31 : index
    %c0_75 = arith.constant 0 : index
    %c0_76 = arith.constant 0 : index
    %168 = vector.load %arg3[%c31, %c0_75, %c0_76] : memref<36x8x512xf32, #tpu.memory_space<vmem>>, vector<1x8x512xf32>
    %169 = vector.shape_cast %168 : vector<1x8x512xf32> to vector<8x512xf32>
    %170 = arith.mulf %11, %169 : vector<8x512xf32>
    %171 = arith.addf %167, %170 : vector<8x512xf32>
    %c508_i32 = arith.constant 508 : i32
    %172 = tpu.dynamic_rotate %11 by %c508_i32 dim 1 : vector<8x512xf32>, i32 -> vector<8x512xf32>
    %c32 = arith.constant 32 : index
    %c0_77 = arith.constant 0 : index
    %c0_78 = arith.constant 0 : index
    %173 = vector.load %arg3[%c32, %c0_77, %c0_78] : memref<36x8x512xf32, #tpu.memory_space<vmem>>, vector<1x8x512xf32>
    %174 = vector.shape_cast %173 : vector<1x8x512xf32> to vector<8x512xf32>
    %175 = arith.mulf %172, %174 : vector<8x512xf32>
    %176 = arith.addf %171, %175 : vector<8x512xf32>
    %c452_i32 = arith.constant 452 : i32
    %177 = tpu.dynamic_rotate %11 by %c452_i32 dim 1 : vector<8x512xf32>, i32 -> vector<8x512xf32>
    %c33 = arith.constant 33 : index
    %c0_79 = arith.constant 0 : index
    %c0_80 = arith.constant 0 : index
    %178 = vector.load %arg3[%c33, %c0_79, %c0_80] : memref<36x8x512xf32, #tpu.memory_space<vmem>>, vector<1x8x512xf32>
    %179 = vector.shape_cast %178 : vector<1x8x512xf32> to vector<8x512xf32>
    %180 = arith.mulf %177, %179 : vector<8x512xf32>
    %181 = arith.addf %176, %180 : vector<8x512xf32>
    %c448_i32 = arith.constant 448 : i32
    %182 = tpu.dynamic_rotate %11 by %c448_i32 dim 1 : vector<8x512xf32>, i32 -> vector<8x512xf32>
    %c34 = arith.constant 34 : index
    %c0_81 = arith.constant 0 : index
    %c0_82 = arith.constant 0 : index
    %183 = vector.load %arg3[%c34, %c0_81, %c0_82] : memref<36x8x512xf32, #tpu.memory_space<vmem>>, vector<1x8x512xf32>
    %184 = vector.shape_cast %183 : vector<1x8x512xf32> to vector<8x512xf32>
    %185 = arith.mulf %182, %184 : vector<8x512xf32>
    %186 = arith.addf %181, %185 : vector<8x512xf32>
    %c444_i32 = arith.constant 444 : i32
    %187 = tpu.dynamic_rotate %11 by %c444_i32 dim 1 : vector<8x512xf32>, i32 -> vector<8x512xf32>
    %c35 = arith.constant 35 : index
    %c0_83 = arith.constant 0 : index
    %c0_84 = arith.constant 0 : index
    %188 = vector.load %arg3[%c35, %c0_83, %c0_84] : memref<36x8x512xf32, #tpu.memory_space<vmem>>, vector<1x8x512xf32>
    %189 = vector.shape_cast %188 : vector<1x8x512xf32> to vector<8x512xf32>
    %190 = arith.mulf %187, %189 : vector<8x512xf32>
    %191 = arith.addf %186, %190 : vector<8x512xf32>
    %192 = tpu.concatenate %56, %101, %146, %191 in 0 : vector<8x512xf32>, vector<8x512xf32>, vector<8x512xf32>, vector<8x512xf32> -> vector<32x512xf32>
    %c0_85 = arith.constant 0 : index
    %c0_86 = arith.constant 0 : index
    %193 = vector.load %arg4[%c0_85, %c0_86] : memref<32x7xf32, #tpu.memory_space<vmem>>, vector<32x1xf32>
    %194 = vector.broadcast %193 : vector<32x1xf32> to vector<32x512xf32>
    %195 = arith.addf %192, %194 : vector<32x512xf32>
    %cst_87 = arith.constant 0.000000e+00 : f32
    %196 = vector.broadcast %cst_87 : f32 to vector<32x512xf32>
    %197 = arith.cmpf ogt, %195, %196 : vector<32x512xf32>
    %c0_88 = arith.constant 0 : index
    %c1_89 = arith.constant 1 : index
    %198 = vector.load %arg4[%c0_88, %c1_89] : memref<32x7xf32, #tpu.memory_space<vmem>>, vector<32x1xf32>
    %199 = vector.broadcast %198 : vector<32x1xf32> to vector<32x512xf32>
    %200 = arith.mulf %199, %195 : vector<32x512xf32>
    %201 = arith.select %197, %195, %200 : vector<32x512xi1>, vector<32x512xf32>
    %c0_90 = arith.constant 0 : index
    %c2_91 = arith.constant 2 : index
    %202 = vector.load %arg4[%c0_90, %c2_91] : memref<32x7xf32, #tpu.memory_space<vmem>>, vector<32x2xf32>
    %c0_92 = arith.constant 0 : index
    %c4_93 = arith.constant 4 : index
    %203 = vector.load %arg4[%c0_92, %c4_93] : memref<32x7xf32, #tpu.memory_space<vmem>>, vector<32x2xf32>
    %c0_94 = arith.constant 0 : index
    %c6_95 = arith.constant 6 : index
    %204 = vector.load %arg4[%c0_94, %c6_95] : memref<32x7xf32, #tpu.memory_space<vmem>>, vector<32x1xf32>
    %c0_96 = arith.constant 0 : index
    %c0_97 = arith.constant 0 : index
    %205 = vector.load %arg5[%c0_96, %c0_97] : memref<1x2xf32, #tpu.memory_space<vmem>>, vector<1x2xf32>
    %206 = vector.extract_strided_slice %201 {offsets = [0, 0], sizes = [32, 256], strides = [1, 1]} : vector<32x512xf32> to vector<32x256xf32>
    %cst_98 = arith.constant dense<0.000000e+00> : vector<32xf32>
    %207 = vector.multi_reduction <add>, %206, %cst_98 [1] : vector<32x256xf32> to vector<32xf32>
    %208 = vector.shape_cast %207 : vector<32xf32> to vector<32x1xf32>
    %cst_99 = arith.constant 3.906250e-03 : f32
    %209 = vector.broadcast %cst_99 : f32 to vector<32x1xf32>
    %210 = arith.mulf %208, %209 : vector<32x1xf32>
    %211 = vector.broadcast %210 : vector<32x1xf32> to vector<32x2xf32>
    %212 = arith.mulf %202, %211 : vector<32x2xf32>
    %cst_100 = arith.constant dense<0.000000e+00> : vector<2xf32>
    %213 = vector.multi_reduction <add>, %212, %cst_100 [0] : vector<32x2xf32> to vector<2xf32>
    %214 = vector.shape_cast %213 : vector<2xf32> to vector<1x2xf32>
    %215 = arith.addf %214, %205 : vector<1x2xf32>
    %cst_101 = arith.constant 0.000000e+00 : f32
    %216 = vector.broadcast %cst_101 : f32 to vector<1x2xf32>
    %217 = arith.maximumf %215, %216 : vector<1x2xf32>
    %218 = vector.broadcast %217 : vector<1x2xf32> to vector<32x2xf32>
    %219 = arith.mulf %203, %218 : vector<32x2xf32>
    %cst_102 = arith.constant dense<0.000000e+00> : vector<32xf32>
    %220 = vector.multi_reduction <add>, %219, %cst_102 [1] : vector<32x2xf32> to vector<32xf32>
    %221 = vector.shape_cast %220 : vector<32xf32> to vector<32x1xf32>
    %222 = arith.addf %221, %204 : vector<32x1xf32>
    %223 = arith.negf %222 : vector<32x1xf32>
    %224 = math.exp %223 : vector<32x1xf32>
    %cst_103 = arith.constant 1.000000e+00 : f32
    %225 = vector.broadcast %cst_103 : f32 to vector<32x1xf32>
    %226 = arith.addf %225, %224 : vector<32x1xf32>
    %227 = arith.divf %225, %226 : vector<32x1xf32>
    %c0_104 = arith.constant 0 : index
    %c0_105 = arith.constant 0 : index
    %228 = vector.load %arg0[%c0_104, %c0_105] : memref<32x512xf32, #tpu.memory_space<vmem>>, vector<32x256xf32>
    %229 = vector.broadcast %227 : vector<32x1xf32> to vector<32x256xf32>
    %230 = arith.mulf %206, %229 : vector<32x256xf32>
    %231 = arith.addf %228, %230 : vector<32x256xf32>
    %c0_106 = arith.constant 0 : index
    %c0_107 = arith.constant 0 : index
    %232 = vector.load %arg6[%c0_106, %c0_107] : memref<32x512xf32, #tpu.memory_space<vmem>>, vector<32x256xf32>
    tpu.vector_store %arg6[%c0_106, %c0_107], %231 {strides = array<i32>} : memref<32x512xf32, #tpu.memory_space<vmem>>, vector<32x256xf32>,
    %233 = vector.extract_strided_slice %201 {offsets = [0, 256], sizes = [32, 256], strides = [1, 1]} : vector<32x512xf32> to vector<32x256xf32>
    %cst_108 = arith.constant dense<0.000000e+00> : vector<32xf32>
    %234 = vector.multi_reduction <add>, %233, %cst_108 [1] : vector<32x256xf32> to vector<32xf32>
    %235 = vector.shape_cast %234 : vector<32xf32> to vector<32x1xf32>
    %cst_109 = arith.constant 3.906250e-03 : f32
    %236 = vector.broadcast %cst_109 : f32 to vector<32x1xf32>
    %237 = arith.mulf %235, %236 : vector<32x1xf32>
    %238 = vector.broadcast %237 : vector<32x1xf32> to vector<32x2xf32>
    %239 = arith.mulf %202, %238 : vector<32x2xf32>
    %cst_110 = arith.constant dense<0.000000e+00> : vector<2xf32>
    %240 = vector.multi_reduction <add>, %239, %cst_110 [0] : vector<32x2xf32> to vector<2xf32>
    %241 = vector.shape_cast %240 : vector<2xf32> to vector<1x2xf32>
    %242 = arith.addf %241, %205 : vector<1x2xf32>
    %cst_111 = arith.constant 0.000000e+00 : f32
    %243 = vector.broadcast %cst_111 : f32 to vector<1x2xf32>
    %244 = arith.maximumf %242, %243 : vector<1x2xf32>
    %245 = vector.broadcast %244 : vector<1x2xf32> to vector<32x2xf32>
    %246 = arith.mulf %203, %245 : vector<32x2xf32>
    %cst_112 = arith.constant dense<0.000000e+00> : vector<32xf32>
    %247 = vector.multi_reduction <add>, %246, %cst_112 [1] : vector<32x2xf32> to vector<32xf32>
    %248 = vector.shape_cast %247 : vector<32xf32> to vector<32x1xf32>
    %249 = arith.addf %248, %204 : vector<32x1xf32>
    %250 = arith.negf %249 : vector<32x1xf32>
    %251 = math.exp %250 : vector<32x1xf32>
    %cst_113 = arith.constant 1.000000e+00 : f32
    %252 = vector.broadcast %cst_113 : f32 to vector<32x1xf32>
    %253 = arith.addf %252, %251 : vector<32x1xf32>
    %254 = arith.divf %252, %253 : vector<32x1xf32>
    %c0_114 = arith.constant 0 : index
    %c256 = arith.constant 256 : index
    %255 = vector.load %arg0[%c0_114, %c256] : memref<32x512xf32, #tpu.memory_space<vmem>>, vector<32x256xf32>
    %256 = vector.broadcast %254 : vector<32x1xf32> to vector<32x256xf32>
    %257 = arith.mulf %233, %256 : vector<32x256xf32>
    %258 = arith.addf %255, %257 : vector<32x256xf32>
    %c0_115 = arith.constant 0 : index
    %c256_116 = arith.constant 256 : index
    %259 = vector.load %arg6[%c0_115, %c256_116] : memref<32x512xf32, #tpu.memory_space<vmem>>, vector<32x256xf32>
    tpu.vector_store %arg6[%c0_115, %c256_116], %258 {strides = array<i32>} : memref<32x512xf32, #tpu.memory_space<vmem>>, vector<32x256xf32>,
    return
  }
}

</mosaic_0001>

<llo_original>
// kernel: tpu_custom_call.1
$region0: #{tpu_custom_call.1}
  #allocation0 [shape = 'u32[]', space=smem, size = 0x4, offset = 0x4, fixed_abs, tag = 'smem constant byte address 0x4 - core index']
  #allocation1 [shape = 'u32[144,128]{1,0:T(1,128)}', space=vmem, size = 0x12000, scoped, tag = 'internal scratch']
  %s0 = inlined_call_operand.hbm [shape: f32[32,512], index: 0, kind: input, shape index: {}]
  %s1 = inlined_call_operand.vmem [shape: f32[8,32], index: 1, kind: input, shape index: {}]
  %s2 = inlined_call_operand.vmem [shape: f32[8,2], index: 2, kind: input, shape index: {}]
  %s3 = inlined_call_operand.hbm [shape: f32[36,8,512], index: 3, kind: input, shape index: {}]
  %s4 = inlined_call_operand.vmem [shape: f32[32,7], index: 4, kind: input, shape index: {}]
  %s5 = inlined_call_operand.vmem [shape: f32[1,2], index: 5, kind: input, shape index: {}]
  %s6 = inlined_call_operand.hbm [shape: f32[32,512], index: 6, kind: output, shape index: {}]
  %s7 = sld [smem:[#allocation0]]
  $region42: #{tpu_custom_call.1} parent=0
    _
  %s9 = ssub.s32 1, %s7
  %s10 = scalar_select 0, %s9, %s7
  $region1: #{tpu_custom_call.1} parent=0
    #allocation2 [shape = 'u8[65536]{0}', space=vmem, size = 0x10000, scoped, tag = 'input window, operand 0, single buffered']
    #allocation3 [shape = 's32[1]{0}', space=sflag, size = 0x4, scoped, tag = 'scoped memory for tpu_custom_call.1']
    #allocation4 [shape = 's32[1]{0}', space=sflag, size = 0x4, scoped, tag = 'scoped memory for tpu_custom_call.1']
    #allocation5 [shape = 'u8[589824]{0}', space=vmem, size = 0x90000, scoped, tag = 'input window, operand 3, single buffered']
    #allocation6 [shape = 's32[1]{0}', space=sflag, size = 0x4, scoped, tag = 'scoped memory for tpu_custom_call.1']
    #allocation7 [shape = 'u8[65536]{0}', space=vmem, size = 0x10000, scoped, tag = 'output window, operand 0, single buffered']
    %11 = vsyncpa [#allocation3], 0
    %12 = vsyncpa [#allocation6], 0
    %13 = vsyncpa [#allocation4], 0
    // Predicated region
    $region2: #{tpu_custom_call.1} parent=1 // pred_check
      _
    $region3: #{tpu_custom_call.1} parent=1 // pred_check_branch
      %15 = sbr.rel (0) target = $region5
    $region4: #{tpu_custom_call.1} parent=1 // pred_region
      %s17 = ssub.s32 2048, 2048
      %18 = vsyncadd [#allocation3], %s17
      %s19 = sshll.u32 [#allocation2], 4
      %s20 = int_to_ptr.vmem [resolvable:$true] %s19
      %25 = dma.hbm_to_vmem [thread:$0]  %s0, 2048, %s20, [#allocation3], 512, 512, 32
    $region5: #{tpu_custom_call.1} parent=1 // pred_fallthru
      _
    // Predicated region
    $region6: #{tpu_custom_call.1} parent=1 // pred_check
      _
    $region7: #{tpu_custom_call.1} parent=1 // pred_check_branch
      %27 = sbr.rel (0) target = $region9
    $region8: #{tpu_custom_call.1} parent=1 // pred_region
      _
    $region9: #{tpu_custom_call.1} parent=1 // pred_fallthru
      _
    // Predicated region
    $region10: #{tpu_custom_call.1} parent=1 // pred_check
      _
    $region11: #{tpu_custom_call.1} parent=1 // pred_check_branch
      %29 = sbr.rel (0) target = $region13
    $region12: #{tpu_custom_call.1} parent=1 // pred_region
      _
    $region13: #{tpu_custom_call.1} parent=1 // pred_fallthru
      _
    // Predicated region
    $region14: #{tpu_custom_call.1} parent=1 // pred_check
      _
    $region15: #{tpu_custom_call.1} parent=1 // pred_check_branch
      %31 = sbr.rel (0) target = $region17
    $region16: #{tpu_custom_call.1} parent=1 // pred_region
      %s33 = ssub.s32 18432, 18432
      %34 = vsyncadd [#allocation6], %s33
      %s35 = sshll.u32 [#allocation5], 4
      %s36 = int_to_ptr.vmem [resolvable:$true] %s35
      %41 = dma.hbm_to_vmem [thread:$0]  %s3, 18432, %s36, [#allocation6], 512, 512, 32
    $region17: #{tpu_custom_call.1} parent=1 // pred_fallthru
      _
    // Predicated region
    $region18: #{tpu_custom_call.1} parent=1 // pred_check
      _
    $region19: #{tpu_custom_call.1} parent=1 // pred_check_branch
      %43 = sbr.rel (0) target = $region21
    $region20: #{tpu_custom_call.1} parent=1 // pred_region
      _
    $region21: #{tpu_custom_call.1} parent=1 // pred_fallthru
      _
    // Predicated region
    $region22: #{tpu_custom_call.1} parent=1 // pred_check
      _
    $region23: #{tpu_custom_call.1} parent=1 // pred_check_branch
      %45 = sbr.rel (0) target = $region25
    $region24: #{tpu_custom_call.1} parent=1 // pred_region
      _
    $region25: #{tpu_custom_call.1} parent=1 // pred_fallthru
      _
    // Predicated region
    $region26: #{tpu_custom_call.1} parent=1 // pred_check
      _
    $region27: #{tpu_custom_call.1} parent=1 // pred_check_branch
      %47 = sbr.rel (0) target = $region29
    $region28: #{tpu_custom_call.1} parent=1 // pred_region
      %48 = dma.done [#allocation3], 2048
    $region29: #{tpu_custom_call.1} parent=1 // pred_fallthru
      _
    // Predicated region
    $region30: #{tpu_custom_call.1} parent=1 // pred_check
      _
    $region31: #{tpu_custom_call.1} parent=1 // pred_check_branch
      %50 = sbr.rel (0) target = $region33
    $region32: #{tpu_custom_call.1} parent=1 // pred_region
      %51 = dma.done [#allocation6], 18432
    $region33: #{tpu_custom_call.1} parent=1 // pred_fallthru
      _
    %v52 = vld [vmem:[%s1] sm:$0xff]
    %v53 = vld [vmem:[#allocation2] sm:$0xff]
    %v54 = vld [vmem:[#allocation2 + $0x8] sm:$0xff]
    %v55 = vld [vmem:[#allocation2 + $0x10] sm:$0xff]
    %v56 = vld [vmem:[#allocation2 + $0x18] sm:$0xff]
    %v57 = vld [vmem:[#allocation2 + $0x20] sm:$0xff]
    %v58 = vld [vmem:[#allocation2 + $0x28] sm:$0xff]
    %v59 = vld [vmem:[#allocation2 + $0x30] sm:$0xff]
    %v60 = vld [vmem:[#allocation2 + $0x38] sm:$0xff]
    %v61 = vld [vmem:[#allocation2 + $0x40] sm:$0xff]
    %v62 = vld [vmem:[#allocation2 + $0x48] sm:$0xff]
    %v63 = vld [vmem:[#allocation2 + $0x50] sm:$0xff]
    %v64 = vld [vmem:[#allocation2 + $0x58] sm:$0xff]
    %v65 = vld [vmem:[#allocation2 + $0x60] sm:$0xff]
    %v66 = vld [vmem:[#allocation2 + $0x68] sm:$0xff]
    %v67 = vld [vmem:[#allocation2 + $0x70] sm:$0xff]
    %v68 = vld [vmem:[#allocation2 + $0x78] sm:$0xff]
    %v69 = vld [vmem:[%s2] sm:$0xff]
    %71 = vset.pattern.permute.xlu0 0
    %72 = vperm.xlu0 %71, %v69
    %v73 = vpop.permute.xlu0 %72
    %vm75 = vcmask 261120
    %v77 = vsel %vm75, %v52, 0
    %79 = vmatprep.subr.mxu0 %v54
    %80 = vmatpush1.msra.mxu0 %v53
    %81 = vmatprep.subr.mxu0 %v58
    %82 = vmatpush1.msra.mxu0 %v57
    %83 = vmatprep.subr.mxu0 %v62
    %84 = vmatpush1.msra.mxu0 %v61
    %85 = vmatprep.subr.mxu0 %v66
    %86 = vmatpush1.msra.mxu0 %v65
    %87 = vmatprep.subr.mxu0 0.0
    %88 = vmatpush1.msra.mxu0 0.0
    %89 = vmatprep.subr.mxu0 0.0
    %90 = vmatpush1.msra.mxu0 0.0
    %91 = vmatprep.subr.mxu0 0.0
    %92 = vmatpush1.msra.mxu0 0.0
    %93 = vmatprep.subr.mxu0 0.0
    %94 = vmatpush1.msra.mxu0 0.0
    %95 = vmatprep.subr.mxu0 0.0
    %96 = vmatpush1.msra.mxu0 0.0
    %97 = vmatprep.subr.mxu0 0.0
    %98 = vmatpush1.msra.mxu0 0.0
    %99 = vmatprep.subr.mxu0 0.0
    %100 = vmatpush1.msra.mxu0 0.0
    %101 = vmatprep.subr.mxu0 0.0
    %102 = vmatpush1.msra.mxu0 0.0
    %103 = vmatprep.subr.mxu0 0.0
    %104 = vmatpush1.msra.mxu0 0.0
    %105 = vmatprep.subr.mxu0 0.0
    %106 = vmatpush1.msra.mxu0 0.0
    %107 = vmatprep.subr.mxu0 0.0
    %108 = vmatpush1.msra.mxu0 0.0
    %109 = vmatprep.subr.mxu0 0.0
    %110 = vmatpush1.msra.mxu0 0.0
    %111 = vmatprep.subr.mxu0 0.0
    %112 = vmatpush1.msra.mxu0 0.0
    %113 = vmatprep.subr.mxu0 0.0
    %114 = vmatpush1.msra.mxu0 0.0
    %115 = vmatprep.subr.mxu0 0.0
    %116 = vmatpush1.msra.mxu0 0.0
    %117 = vmatprep.subr.mxu0 0.0
    %118 = vmatpush1.msra.mxu0 0.0
    %119 = vmatprep.subr.mxu0 0.0
    %120 = vmatpush1.msra.mxu0 0.0
    %121 = vmatprep.subr.mxu0 0.0
    %122 = vmatpush1.msra.mxu0 0.0
    %123 = vmatprep.subr.mxu0 0.0
    %124 = vmatpush1.msra.mxu0 0.0
    %125 = vmatprep.subr.mxu0 0.0
    %126 = vmatpush1.msra.mxu0 0.0
    %127 = vmatprep.subr.mxu0 0.0
    %128 = vmatpush1.msra.mxu0 0.0
    %129 = vmatprep.subr.mxu0 0.0
    %130 = vmatpush1.msra.mxu0 0.0
    %131 = vmatprep.subr.mxu0 0.0
    %132 = vmatpush1.msra.mxu0 0.0
    %133 = vmatprep.subr.mxu0 0.0
    %134 = vmatpush1.msra.mxu0 0.0
    %135 = vmatprep.subr.mxu0 0.0
    %136 = vmatpush1.msra.mxu0 0.0
    %137 = vmatprep.subr.mxu0 0.0
    %138 = vmatpush1.msra.mxu0 0.0
    %139 = vmatprep.subr.mxu0 0.0
    %140 = vmatpush1.msra.mxu0 0.0
    %141 = vmatprep.subr.mxu0 0.0
    %142 = vmatpush1.msra.mxu0 0.0
    %143 = vmatprep.mubr.f32.mxu0 0.0
    %144 = vmatmul.mubr.f32.gmra.mrb[0].mxu0 %v77
    %v145 = vpop.f32.mrb[0].mxu0
    %v146 = vadd.f32 %v73, %v145
    %v147 = vpop.f32.mrb[0].mxu0
    %v148 = vadd.f32 %v73, %v147
    %149 = vdwg.mxu0
    %150 = vmatprep.subr.mxu0 %v56
    %151 = vmatpush1.msra.mxu0 %v55
    %152 = vmatprep.subr.mxu0 %v60
    %153 = vmatpush1.msra.mxu0 %v59
    %154 = vmatprep.subr.mxu0 %v64
    %155 = vmatpush1.msra.mxu0 %v63
    %156 = vmatprep.subr.mxu0 %v68
    %157 = vmatpush1.msra.mxu0 %v67
    %158 = vmatprep.subr.mxu0 0.0
    %159 = vmatpush1.msra.mxu0 0.0
    %160 = vmatprep.subr.mxu0 0.0
    %161 = vmatpush1.msra.mxu0 0.0
    %162 = vmatprep.subr.mxu0 0.0
    %163 = vmatpush1.msra.mxu0 0.0
    %164 = vmatprep.subr.mxu0 0.0
    %165 = vmatpush1.msra.mxu0 0.0
    %166 = vmatprep.subr.mxu0 0.0
    %167 = vmatpush1.msra.mxu0 0.0
    %168 = vmatprep.subr.mxu0 0.0
    %169 = vmatpush1.msra.mxu0 0.0
    %170 = vmatprep.subr.mxu0 0.0
    %171 = vmatpush1.msra.mxu0 0.0
    %172 = vmatprep.subr.mxu0 0.0
    %173 = vmatpush1.msra.mxu0 0.0
    %174 = vmatprep.subr.mxu0 0.0
    %175 = vmatpush1.msra.mxu0 0.0
    %176 = vmatprep.subr.mxu0 0.0
    %177 = vmatpush1.msra.mxu0 0.0
    %178 = vmatprep.subr.mxu0 0.0
    %179 = vmatpush1.msra.mxu0 0.0
    %180 = vmatprep.subr.mxu0 0.0
    %181 = vmatpush1.msra.mxu0 0.0
    %182 = vmatprep.subr.mxu0 0.0
    %183 = vmatpush1.msra.mxu0 0.0
    %184 = vmatprep.subr.mxu0 0.0
    %185 = vmatpush1.msra.mxu0 0.0
    %186 = vmatprep.subr.mxu0 0.0
    %187 = vmatpush1.msra.mxu0 0.0
    %188 = vmatprep.subr.mxu0 0.0
    %189 = vmatpush1.msra.mxu0 0.0
    %190 = vmatprep.subr.mxu0 0.0
    %191 = vmatpush1.msra.mxu0 0.0
    %192 = vmatprep.subr.mxu0 0.0
    %193 = vmatpush1.msra.mxu0 0.0
    %194 = vmatprep.subr.mxu0 0.0
    %195 = vmatpush1.msra.mxu0 0.0
    %196 = vmatprep.subr.mxu0 0.0
    %197 = vmatpush1.msra.mxu0 0.0
    %198 = vmatprep.subr.mxu0 0.0
    %199 = vmatpush1.msra.mxu0 0.0
    %200 = vmatprep.subr.mxu0 0.0
    %201 = vmatpush1.msra.mxu0 0.0
    %202 = vmatprep.subr.mxu0 0.0
    %203 = vmatpush1.msra.mxu0 0.0
    %204 = vmatprep.subr.mxu0 0.0
    %205 = vmatpush1.msra.mxu0 0.0
    %206 = vmatprep.subr.mxu0 0.0
    %207 = vmatpush1.msra.mxu0 0.0
    %208 = vmatprep.subr.mxu0 0.0
    %209 = vmatpush1.msra.mxu0 0.0
    %210 = vmatprep.subr.mxu0 0.0
    %211 = vmatpush1.msra.mxu0 0.0
    %212 = vmatprep.subr.mxu0 0.0
    %213 = vmatpush1.msra.mxu0 0.0
    %214 = vmatprep.mubr.f32.mxu0 0.0
    %215 = vmatmul.mubr.f32.gmra.mrb[0].mxu0 %v77
    %v216 = vpop.f32.mrb[0].mxu0
    %v217 = vadd.f32 %v73, %v216
    %v218 = vpop.f32.mrb[0].mxu0
    %v219 = vadd.f32 %v73, %v218
    %220 = vdwg.mxu0
    %vm221 = vcmp.gt.f32.partialorder %v146, 0.0
    %vm222 = vcmp.gt.f32.partialorder %v148, 0.0
    %vm223 = vcmp.gt.f32.partialorder %v217, 0.0
    %vm224 = vcmp.gt.f32.partialorder %v219, 0.0
    %225 = vset.pattern.permute.xlu0 1
    %226 = vperm.xlu0 %225, %v69
    %v227 = vpop.permute.xlu0 %226
    %v229 = vmul.f32 %v227, %v146
    %v230 = vmul.f32 %v227, %v148
    %v231 = vmul.f32 %v227, %v217
    %v232 = vmul.f32 %v227, %v219
    %v233 = vsel %vm221, %v146, %v229
    %v234 = vsel %vm222, %v148, %v230
    %v235 = vsel %vm223, %v217, %v231
    %v236 = vsel %vm224, %v219, %v232
    %237 = vrot.lane.b32.xlu0 %v233, 17
    %v238 = vpop.permute.xlu0 %237
    %239 = vrot.lane.b32.xlu0 %v234, 17
    %v240 = vpop.permute.xlu0 %239
    %241 = vrot.lane.b32.xlu0 %v235, 17
    %v242 = vpop.permute.xlu0 %241
    %243 = vrot.lane.b32.xlu0 %v236, 17
    %v244 = vpop.permute.xlu0 %243
    %v245 = vlaneseq
    %v246 = vand.u32 %v245, 127
    %vm247 = vcmp.lt.s32.totalorder %v246, 17
    %v248 = vsel %vm247, %v242, %v244
    %v249 = vsel %vm247, %v240, %v242
    %v250 = vsel %vm247, %v238, %v240
    %v251 = vsel %vm247, %v244, %v238
    %v252 = vld [vmem:[#allocation5] sm:$0xff]
    %v253 = vld [vmem:[#allocation5 + $0x8] sm:$0xff]
    %v254 = vld [vmem:[#allocation5 + $0x10] sm:$0xff]
    %v255 = vld [vmem:[#allocation5 + $0x18] sm:$0xff]
    %v256 = vmul.f32 %v251, %v252
    %v257 = vmul.f32 %v250, %v253
    %v258 = vmul.f32 %v249, %v254
    %v259 = vmul.f32 %v248, %v255
    %v260 = vadd.f32 %v256, 0.0
    %v261 = vadd.f32 %v257, 0.0
    %v262 = vadd.f32 %v258, 0.0
    %v263 = vadd.f32 %v259, 0.0
    %264 = vrot.lane.b32.xlu0 %v233, 16
    %v265 = vpop.permute.xlu0 %264
    %266 = vrot.lane.b32.xlu0 %v234, 16
    %v267 = vpop.permute.xlu0 %266
    %268 = vrot.lane.b32.xlu0 %v235, 16
    %v269 = vpop.permute.xlu0 %268
    %270 = vrot.lane.b32.xlu0 %v236, 16
    %v271 = vpop.permute.xlu0 %270
    %vm272 = vcmp.lt.s32.totalorder %v246, 16
    %v273 = vsel %vm272, %v269, %v271
    %v274 = vsel %vm272, %v267, %v269
    %v275 = vsel %vm272, %v265, %v267
    %v276 = vsel %vm272, %v271, %v265
    %s277 = scalar_lea.vmem [#allocation5], 32
    %v278 = vld [vmem:[%s277] sm:$0xff]
    %v279 = vld [vmem:[%s277 + $0x8] sm:$0xff]
    %v280 = vld [vmem:[%s277 + $0x10] sm:$0xff]
    %v281 = vld [vmem:[%s277 + $0x18] sm:$0xff]
    %v282 = vmul.f32 %v276, %v278
    %v283 = vmul.f32 %v275, %v279
    %v284 = vmul.f32 %v274, %v280
    %v285 = vmul.f32 %v273, %v281
    %v286 = vadd.f32 %v260, %v282
    %v287 = vadd.f32 %v261, %v283
    %v288 = vadd.f32 %v262, %v284
    %v289 = vadd.f32 %v263, %v285
    %290 = vrot.lane.b32.xlu0 %v233, 15
    %v291 = vpop.permute.xlu0 %290
    %292 = vrot.lane.b32.xlu0 %v234, 15
    %v293 = vpop.permute.xlu0 %292
    %294 = vrot.lane.b32.xlu0 %v235, 15
    %v295 = vpop.permute.xlu0 %294
    %296 = vrot.lane.b32.xlu0 %v236, 15
    %v297 = vpop.permute.xlu0 %296
    %vm298 = vcmp.lt.s32.totalorder %v246, 15
    %v299 = vsel %vm298, %v295, %v297
    %v300 = vsel %vm298, %v293, %v295
    %v301 = vsel %vm298, %v291, %v293
    %v302 = vsel %vm298, %v297, %v291
    %s303 = scalar_lea.vmem [#allocation5], 64
    %v304 = vld [vmem:[%s303] sm:$0xff]
    %v305 = vld [vmem:[%s303 + $0x8] sm:$0xff]
    %v306 = vld [vmem:[%s303 + $0x10] sm:$0xff]
    %v307 = vld [vmem:[%s303 + $0x18] sm:$0xff]
    %v308 = vmul.f32 %v302, %v304
    %v309 = vmul.f32 %v301, %v305
    %v310 = vmul.f32 %v300, %v306
    %v311 = vmul.f32 %v299, %v307
    %v312 = vadd.f32 %v286, %v308
    %v313 = vadd.f32 %v287, %v309
    %v314 = vadd.f32 %v288, %v310
    %v315 = vadd.f32 %v289, %v311
    %316 = vrot.lane.b32.xlu0 %v233, 1
    %v317 = vpop.permute.xlu0 %316
    %318 = vrot.lane.b32.xlu0 %v234, 1
    %v319 = vpop.permute.xlu0 %318
    %320 = vrot.lane.b32.xlu0 %v235, 1
    %v321 = vpop.permute.xlu0 %320
    %322 = vrot.lane.b32.xlu0 %v236, 1
    %v323 = vpop.permute.xlu0 %322
    %vm324 = vcmp.lt.s32.totalorder %v246, 1
    %v325 = vsel %vm324, %v321, %v323
    %v326 = vsel %vm324, %v319, %v321
    %v327 = vsel %vm324, %v317, %v319
    %v328 = vsel %vm324, %v323, %v317
    %s329 = scalar_lea.vmem [#allocation5], 96
    %v330 = vld [vmem:[%s329] sm:$0xff]
    %v331 = vld [vmem:[%s329 + $0x8] sm:$0xff]
    %v332 = vld [vmem:[%s329 + $0x10] sm:$0xff]
    %v333 = vld [vmem:[%s329 + $0x18] sm:$0xff]
    %v334 = vmul.f32 %v328, %v330
    %v335 = vmul.f32 %v327, %v331
    %v336 = vmul.f32 %v326, %v332
    %v337 = vmul.f32 %v325, %v333
    %v338 = vadd.f32 %v312, %v334
    %v339 = vadd.f32 %v313, %v335
    %v340 = vadd.f32 %v314, %v336
    %v341 = vadd.f32 %v315, %v337
    %s342 = scalar_lea.vmem [#allocation5], 128
    %v343 = vld [vmem:[%s342] sm:$0xff]
    %v344 = vld [vmem:[%s342 + $0x8] sm:$0xff]
    %v345 = vld [vmem:[%s342 + $0x10] sm:$0xff]
    %v346 = vld [vmem:[%s342 + $0x18] sm:$0xff]
    %v347 = vmul.f32 %v233, %v343
    %v348 = vmul.f32 %v234, %v344
    %v349 = vmul.f32 %v235, %v345
    %v350 = vmul.f32 %v236, %v346
    %v351 = vadd.f32 %v338, %v347
    %v352 = vadd.f32 %v339, %v348
    %v353 = vadd.f32 %v340, %v349
    %v354 = vadd.f32 %v341, %v350
    %355 = vrot.lane.b32.xlu0 %v233, 127
    %v356 = vpop.permute.xlu0 %355
    %357 = vrot.lane.b32.xlu0 %v234, 127
    %v358 = vpop.permute.xlu0 %357
    %359 = vrot.lane.b32.xlu0 %v235, 127
    %v360 = vpop.permute.xlu0 %359
    %361 = vrot.lane.b32.xlu0 %v236, 127
    %v362 = vpop.permute.xlu0 %361
    %vm363 = vcmp.lt.s32.totalorder %v246, 127
    %v364 = vsel %vm363, %v360, %v362
    %v365 = vsel %vm363, %v358, %v360
    %v366 = vsel %vm363, %v356, %v358
    %v367 = vsel %vm363, %v362, %v356
    %s368 = scalar_lea.vmem [#allocation5], 160
    %v369 = vld [vmem:[%s368] sm:$0xff]
    %v370 = vld [vmem:[%s368 + $0x8] sm:$0xff]
    %v371 = vld [vmem:[%s368 + $0x10] sm:$0xff]
    %v372 = vld [vmem:[%s368 + $0x18] sm:$0xff]
    %v373 = vmul.f32 %v366, %v369
    %v374 = vmul.f32 %v365, %v370
    %v375 = vmul.f32 %v364, %v371
    %v376 = vmul.f32 %v367, %v372
    %v377 = vadd.f32 %v351, %v373
    %v378 = vadd.f32 %v352, %v374
    %v379 = vadd.f32 %v353, %v375
    %v380 = vadd.f32 %v354, %v376
    %381 = vrot.lane.b32.xlu0 %v233, 113
    %v382 = vpop.permute.xlu0 %381
    %383 = vrot.lane.b32.xlu0 %v234, 113
    %v384 = vpop.permute.xlu0 %383
    %385 = vrot.lane.b32.xlu0 %v235, 113
    %v386 = vpop.permute.xlu0 %385
    %387 = vrot.lane.b32.xlu0 %v236, 113
    %v388 = vpop.permute.xlu0 %387
    %vm389 = vcmp.lt.s32.totalorder %v246, 113
    %v390 = vsel %vm389, %v386, %v388
    %v391 = vsel %vm389, %v384, %v386
    %v392 = vsel %vm389, %v382, %v384
    %v393 = vsel %vm389, %v388, %v382
    %s394 = scalar_lea.vmem [#allocation5], 192
    %v395 = vld [vmem:[%s394] sm:$0xff]
    %v396 = vld [vmem:[%s394 + $0x8] sm:$0xff]
    %v397 = vld [vmem:[%s394 + $0x10] sm:$0xff]
    %v398 = vld [vmem:[%s394 + $0x18] sm:$0xff]
    %v399 = vmul.f32 %v392, %v395
    %v400 = vmul.f32 %v391, %v396
    %v401 = vmul.f32 %v390, %v397
    %v402 = vmul.f32 %v393, %v398
    %v403 = vadd.f32 %v377, %v399
    %v404 = vadd.f32 %v378, %v400
    %v405 = vadd.f32 %v379, %v401
    %v406 = vadd.f32 %v380, %v402
    %407 = vrot.lane.b32.xlu0 %v233, 112
    %v408 = vpop.permute.xlu0 %407
    %409 = vrot.lane.b32.xlu0 %v234, 112
    %v410 = vpop.permute.xlu0 %409
    %411 = vrot.lane.b32.xlu0 %v235, 112
    %v412 = vpop.permute.xlu0 %411
    %413 = vrot.lane.b32.xlu0 %v236, 112
    %v414 = vpop.permute.xlu0 %413
    %vm415 = vcmp.lt.s32.totalorder %v246, 112
    %v416 = vsel %vm415, %v412, %v414
    %v417 = vsel %vm415, %v410, %v412
    %v418 = vsel %vm415, %v408, %v410
    %v419 = vsel %vm415, %v414, %v408
    %s420 = scalar_lea.vmem [#allocation5], 224
    %v421 = vld [vmem:[%s420] sm:$0xff]
    %v422 = vld [vmem:[%s420 + $0x8] sm:$0xff]
    %v423 = vld [vmem:[%s420 + $0x10] sm:$0xff]
    %v424 = vld [vmem:[%s420 + $0x18] sm:$0xff]
    %v425 = vmul.f32 %v418, %v421
    %v426 = vmul.f32 %v417, %v422
    %v427 = vmul.f32 %v416, %v423
    %v428 = vmul.f32 %v419, %v424
    %v429 = vadd.f32 %v403, %v425
    %v430 = vadd.f32 %v404, %v426
    %v431 = vadd.f32 %v405, %v427
    %v432 = vadd.f32 %v406, %v428
    %433 = vrot.lane.b32.xlu0 %v233, 111
    %v434 = vpop.permute.xlu0 %433
    %435 = vrot.lane.b32.xlu0 %v234, 111
    %v436 = vpop.permute.xlu0 %435
    %437 = vrot.lane.b32.xlu0 %v235, 111
    %v438 = vpop.permute.xlu0 %437
    %439 = vrot.lane.b32.xlu0 %v236, 111
    %v440 = vpop.permute.xlu0 %439
    %vm441 = vcmp.lt.s32.totalorder %v246, 111
    %v442 = vsel %vm441, %v438, %v440
    %v443 = vsel %vm441, %v436, %v438
    %v444 = vsel %vm441, %v434, %v436
    %v445 = vsel %vm441, %v440, %v434
    %s446 = scalar_lea.vmem [#allocation5], 256
    %v447 = vld [vmem:[%s446] sm:$0xff]
    %v448 = vld [vmem:[%s446 + $0x8] sm:$0xff]
    %v449 = vld [vmem:[%s446 + $0x10] sm:$0xff]
    %v450 = vld [vmem:[%s446 + $0x18] sm:$0xff]
    %v451 = vmul.f32 %v444, %v447
    %v452 = vmul.f32 %v443, %v448
    %v453 = vmul.f32 %v442, %v449
    %v454 = vmul.f32 %v445, %v450
    %v455 = vadd.f32 %v429, %v451
    %v456 = vadd.f32 %v430, %v452
    %v457 = vadd.f32 %v431, %v453
    %v458 = vadd.f32 %v432, %v454
    %459 = vrot.lane.b32.xlu0 %v233, 34
    %v460 = vpop.permute.xlu0 %459
    %461 = vrot.lane.b32.xlu0 %v234, 34
    %v462 = vpop.permute.xlu0 %461
    %463 = vrot.lane.b32.xlu0 %v235, 34
    %v464 = vpop.permute.xlu0 %463
    %465 = vrot.lane.b32.xlu0 %v236, 34
    %v466 = vpop.permute.xlu0 %465
    %vm467 = vcmp.lt.s32.totalorder %v246, 34
    %v468 = vsel %vm467, %v464, %v466
    %v469 = vsel %vm467, %v462, %v464
    %v470 = vsel %vm467, %v460, %v462
    %v471 = vsel %vm467, %v466, %v460
    %s472 = scalar_lea.vmem [#allocation5], 288
    %v473 = vld [vmem:[%s472] sm:$0xff]
    %v474 = vld [vmem:[%s472 + $0x8] sm:$0xff]
    %v475 = vld [vmem:[%s472 + $0x10] sm:$0xff]
    %v476 = vld [vmem:[%s472 + $0x18] sm:$0xff]
    %v477 = vmul.f32 %v471, %v473
    %v478 = vmul.f32 %v470, %v474
    %v479 = vmul.f32 %v469, %v475
    %v480 = vmul.f32 %v468, %v476
    %v481 = vadd.f32 %v477, 0.0
    %v482 = vadd.f32 %v478, 0.0
    %v483 = vadd.f32 %v479, 0.0
    %v484 = vadd.f32 %v480, 0.0
    %485 = vrot.lane.b32.xlu0 %v233, 32
    %v486 = vpop.permute.xlu0 %485
    %487 = vrot.lane.b32.xlu0 %v234, 32
    %v488 = vpop.permute.xlu0 %487
    %489 = vrot.lane.b32.xlu0 %v235, 32
    %v490 = vpop.permute.xlu0 %489
    %491 = vrot.lane.b32.xlu0 %v236, 32
    %v492 = vpop.permute.xlu0 %491
    %vm493 = vcmp.lt.s32.totalorder %v246, 32
    %v494 = vsel %vm493, %v490, %v492
    %v495 = vsel %vm493, %v488, %v490
    %v496 = vsel %vm493, %v486, %v488
    %v497 = vsel %vm493, %v492, %v486
    %s498 = scalar_lea.vmem [#allocation5], 320
    %v499 = vld [vmem:[%s498] sm:$0xff]
    %v500 = vld [vmem:[%s498 + $0x8] sm:$0xff]
    %v501 = vld [vmem:[%s498 + $0x10] sm:$0xff]
    %v502 = vld [vmem:[%s498 + $0x18] sm:$0xff]
    %v503 = vmul.f32 %v497, %v499
    %v504 = vmul.f32 %v496, %v500
    %v505 = vmul.f32 %v495, %v501
    %v506 = vmul.f32 %v494, %v502
    %v507 = vadd.f32 %v481, %v503
    %v508 = vadd.f32 %v482, %v504
    %v509 = vadd.f32 %v483, %v505
    %v510 = vadd.f32 %v484, %v506
    %511 = vrot.lane.b32.xlu0 %v233, 30
    %v512 = vpop.permute.xlu0 %511
    %513 = vrot.lane.b32.xlu0 %v234, 30
    %v514 = vpop.permute.xlu0 %513
    %515 = vrot.lane.b32.xlu0 %v235, 30
    %v516 = vpop.permute.xlu0 %515
    %517 = vrot.lane.b32.xlu0 %v236, 30
    %v518 = vpop.permute.xlu0 %517
    %vm519 = vcmp.lt.s32.totalorder %v246, 30
    %v520 = vsel %vm519, %v516, %v518
    %v521 = vsel %vm519, %v514, %v516
    %v522 = vsel %vm519, %v512, %v514
    %v523 = vsel %vm519, %v518, %v512
    %s524 = scalar_lea.vmem [#allocation5], 352
    %v525 = vld [vmem:[%s524] sm:$0xff]
    %v526 = vld [vmem:[%s524 + $0x8] sm:$0xff]
    %v527 = vld [vmem:[%s524 + $0x10] sm:$0xff]
    %v528 = vld [vmem:[%s524 + $0x18] sm:$0xff]
    %v529 = vmul.f32 %v523, %v525
    %v530 = vmul.f32 %v522, %v526
    %v531 = vmul.f32 %v521, %v527
    %v532 = vmul.f32 %v520, %v528
    %v533 = vadd.f32 %v507, %v529
    %v534 = vadd.f32 %v508, %v530
    %v535 = vadd.f32 %v509, %v531
    %v536 = vadd.f32 %v510, %v532
    %537 = vrot.lane.b32.xlu0 %v233, 2
    %v538 = vpop.permute.xlu0 %537
    %539 = vrot.lane.b32.xlu0 %v234, 2
    %v540 = vpop.permute.xlu0 %539
    %541 = vrot.lane.b32.xlu0 %v235, 2
    %v542 = vpop.permute.xlu0 %541
    %543 = vrot.lane.b32.xlu0 %v236, 2
    %v544 = vpop.permute.xlu0 %543
    %vm545 = vcmp.lt.s32.totalorder %v246, 2
    %v546 = vsel %vm545, %v542, %v544
    %v547 = vsel %vm545, %v540, %v542
    %v548 = vsel %vm545, %v538, %v540
    %v549 = vsel %vm545, %v544, %v538
    %s550 = scalar_lea.vmem [#allocation5], 384
    %v551 = vld [vmem:[%s550] sm:$0xff]
    %v552 = vld [vmem:[%s550 + $0x8] sm:$0xff]
    %v553 = vld [vmem:[%s550 + $0x10] sm:$0xff]
    %v554 = vld [vmem:[%s550 + $0x18] sm:$0xff]
    %v555 = vmul.f32 %v549, %v551
    %v556 = vmul.f32 %v548, %v552
    %v557 = vmul.f32 %v547, %v553
    %v558 = vmul.f32 %v546, %v554
    %v559 = vadd.f32 %v533, %v555
    %v560 = vadd.f32 %v534, %v556
    %v561 = vadd.f32 %v535, %v557
    %v562 = vadd.f32 %v536, %v558
    %s563 = scalar_lea.vmem [#allocation5], 416
    %v564 = vld [vmem:[%s563] sm:$0xff]
    %v565 = vld [vmem:[%s563 + $0x8] sm:$0xff]
    %v566 = vld [vmem:[%s563 + $0x10] sm:$0xff]
    %v567 = vld [vmem:[%s563 + $0x18] sm:$0xff]
    %v568 = vmul.f32 %v233, %v564
    %v569 = vmul.f32 %v234, %v565
    %v570 = vmul.f32 %v235, %v566
    %v571 = vmul.f32 %v236, %v567
    %v572 = vadd.f32 %v559, %v568
    %v573 = vadd.f32 %v560, %v569
    %v574 = vadd.f32 %v561, %v570
    %v575 = vadd.f32 %v562, %v571
    %576 = vrot.lane.b32.xlu0 %v233, 126
    %v577 = vpop.permute.xlu0 %576
    %578 = vrot.lane.b32.xlu0 %v234, 126
    %v579 = vpop.permute.xlu0 %578
    %580 = vrot.lane.b32.xlu0 %v235, 126
    %v581 = vpop.permute.xlu0 %580
    %582 = vrot.lane.b32.xlu0 %v236, 126
    %v583 = vpop.permute.xlu0 %582
    %vm584 = vcmp.lt.s32.totalorder %v246, 126
    %v585 = vsel %vm584, %v581, %v583
    %v586 = vsel %vm584, %v579, %v581
    %v587 = vsel %vm584, %v577, %v579
    %v588 = vsel %vm584, %v583, %v577
    %s589 = scalar_lea.vmem [#allocation5], 448
    %v590 = vld [vmem:[%s589] sm:$0xff]
    %v591 = vld [vmem:[%s589 + $0x8] sm:$0xff]
    %v592 = vld [vmem:[%s589 + $0x10] sm:$0xff]
    %v593 = vld [vmem:[%s589 + $0x18] sm:$0xff]
    %v594 = vmul.f32 %v587, %v590
    %v595 = vmul.f32 %v586, %v591
    %v596 = vmul.f32 %v585, %v592
    %v597 = vmul.f32 %v588, %v593
    %v598 = vadd.f32 %v572, %v594
    %v599 = vadd.f32 %v573, %v595
    %v600 = vadd.f32 %v574, %v596
    %v601 = vadd.f32 %v575, %v597
    %602 = vrot.lane.b32.xlu0 %v233, 98
    %v603 = vpop.permute.xlu0 %602
    %604 = vrot.lane.b32.xlu0 %v234, 98
    %v605 = vpop.permute.xlu0 %604
    %606 = vrot.lane.b32.xlu0 %v235, 98
    %v607 = vpop.permute.xlu0 %606
    %608 = vrot.lane.b32.xlu0 %v236, 98
    %v609 = vpop.permute.xlu0 %608
    %vm610 = vcmp.lt.s32.totalorder %v246, 98
    %v611 = vsel %vm610, %v607, %v609
    %v612 = vsel %vm610, %v605, %v607
    %v613 = vsel %vm610, %v603, %v605
    %v614 = vsel %vm610, %v609, %v603
    %s615 = scalar_lea.vmem [#allocation5], 480
    %v616 = vld [vmem:[%s615] sm:$0xff]
    %v617 = vld [vmem:[%s615 + $0x8] sm:$0xff]
    %v618 = vld [vmem:[%s615 + $0x10] sm:$0xff]
    %v619 = vld [vmem:[%s615 + $0x18] sm:$0xff]
    %v620 = vmul.f32 %v613, %v616
    %v621 = vmul.f32 %v612, %v617
    %v622 = vmul.f32 %v611, %v618
    %v623 = vmul.f32 %v614, %v619
    %v624 = vadd.f32 %v598, %v620
    %v625 = vadd.f32 %v599, %v621
    %v626 = vadd.f32 %v600, %v622
    %v627 = vadd.f32 %v601, %v623
    %628 = vrot.lane.b32.xlu0 %v233, 96
    %v629 = vpop.permute.xlu0 %628
    %630 = vrot.lane.b32.xlu0 %v234, 96
    %v631 = vpop.permute.xlu0 %630
    %632 = vrot.lane.b32.xlu0 %v235, 96
    %v633 = vpop.permute.xlu0 %632
    %634 = vrot.lane.b32.xlu0 %v236, 96
    %v635 = vpop.permute.xlu0 %634
    %vm636 = vcmp.lt.s32.totalorder %v246, 96
    %v637 = vsel %vm636, %v633, %v635
    %v638 = vsel %vm636, %v631, %v633
    %v639 = vsel %vm636, %v629, %v631
    %v640 = vsel %vm636, %v635, %v629
    %s641 = scalar_lea.vmem [#allocation5], 512
    %v642 = vld [vmem:[%s641] sm:$0xff]
    %v643 = vld [vmem:[%s641 + $0x8] sm:$0xff]
    %v644 = vld [vmem:[%s641 + $0x10] sm:$0xff]
    %v645 = vld [vmem:[%s641 + $0x18] sm:$0xff]
    %v646 = vmul.f32 %v639, %v642
    %v647 = vmul.f32 %v638, %v643
    %v648 = vmul.f32 %v637, %v644
    %v649 = vmul.f32 %v640, %v645
    %v650 = vadd.f32 %v624, %v646
    %v651 = vadd.f32 %v625, %v647
    %v652 = vadd.f32 %v626, %v648
    %v653 = vadd.f32 %v627, %v649
    %654 = vrot.lane.b32.xlu0 %v233, 94
    %v655 = vpop.permute.xlu0 %654
    %656 = vrot.lane.b32.xlu0 %v234, 94
    %v657 = vpop.permute.xlu0 %656
    %658 = vrot.lane.b32.xlu0 %v235, 94
    %v659 = vpop.permute.xlu0 %658
    %660 = vrot.lane.b32.xlu0 %v236, 94
    %v661 = vpop.permute.xlu0 %660
    %vm662 = vcmp.lt.s32.totalorder %v246, 94
    %v663 = vsel %vm662, %v659, %v661
    %v664 = vsel %vm662, %v657, %v659
    %v665 = vsel %vm662, %v655, %v657
    %v666 = vsel %vm662, %v661, %v655
    %s667 = scalar_lea.vmem [#allocation5], 544
    %v668 = vld [vmem:[%s667] sm:$0xff]
    %v669 = vld [vmem:[%s667 + $0x8] sm:$0xff]
    %v670 = vld [vmem:[%s667 + $0x10] sm:$0xff]
    %v671 = vld [vmem:[%s667 + $0x18] sm:$0xff]
    %v672 = vmul.f32 %v665, %v668
    %v673 = vmul.f32 %v664, %v669
    %v674 = vmul.f32 %v663, %v670
    %v675 = vmul.f32 %v666, %v671
    %v676 = vadd.f32 %v650, %v672
    %v677 = vadd.f32 %v651, %v673
    %v678 = vadd.f32 %v652, %v674
    %v679 = vadd.f32 %v653, %v675
    %680 = vrot.lane.b32.xlu0 %v233, 51
    %v681 = vpop.permute.xlu0 %680
    %682 = vrot.lane.b32.xlu0 %v234, 51
    %v683 = vpop.permute.xlu0 %682
    %684 = vrot.lane.b32.xlu0 %v235, 51
    %v685 = vpop.permute.xlu0 %684
    %686 = vrot.lane.b32.xlu0 %v236, 51
    %v687 = vpop.permute.xlu0 %686
    %vm688 = vcmp.lt.s32.totalorder %v246, 51
    %v689 = vsel %vm688, %v685, %v687
    %v690 = vsel %vm688, %v683, %v685
    %v691 = vsel %vm688, %v681, %v683
    %v692 = vsel %vm688, %v687, %v681
    %s693 = scalar_lea.vmem [#allocation5], 576
    %v694 = vld [vmem:[%s693] sm:$0xff]
    %v695 = vld [vmem:[%s693 + $0x8] sm:$0xff]
    %v696 = vld [vmem:[%s693 + $0x10] sm:$0xff]
    %v697 = vld [vmem:[%s693 + $0x18] sm:$0xff]
    %v698 = vmul.f32 %v692, %v694
    %v699 = vmul.f32 %v691, %v695
    %v700 = vmul.f32 %v690, %v696
    %v701 = vmul.f32 %v689, %v697
    %v702 = vadd.f32 %v698, 0.0
    %v703 = vadd.f32 %v699, 0.0
    %v704 = vadd.f32 %v700, 0.0
    %v705 = vadd.f32 %v701, 0.0
    %706 = vrot.lane.b32.xlu0 %v233, 48
    %v707 = vpop.permute.xlu0 %706
    %708 = vrot.lane.b32.xlu0 %v234, 48
    %v709 = vpop.permute.xlu0 %708
    %710 = vrot.lane.b32.xlu0 %v235, 48
    %v711 = vpop.permute.xlu0 %710
    %712 = vrot.lane.b32.xlu0 %v236, 48
    %v713 = vpop.permute.xlu0 %712
    %vm714 = vcmp.lt.s32.totalorder %v246, 48
    %v715 = vsel %vm714, %v711, %v713
    %v716 = vsel %vm714, %v709, %v711
    %v717 = vsel %vm714, %v707, %v709
    %v718 = vsel %vm714, %v713, %v707
    %s719 = scalar_lea.vmem [#allocation5], 608
    %v720 = vld [vmem:[%s719] sm:$0xff]
    %v721 = vld [vmem:[%s719 + $0x8] sm:$0xff]
    %v722 = vld [vmem:[%s719 + $0x10] sm:$0xff]
    %v723 = vld [vmem:[%s719 + $0x18] sm:$0xff]
    %v724 = vmul.f32 %v718, %v720
    %v725 = vmul.f32 %v717, %v721
    %v726 = vmul.f32 %v716, %v722
    %v727 = vmul.f32 %v715, %v723
    %v728 = vadd.f32 %v702, %v724
    %v729 = vadd.f32 %v703, %v725
    %v730 = vadd.f32 %v704, %v726
    %v731 = vadd.f32 %v705, %v727
    %732 = vrot.lane.b32.xlu0 %v233, 45
    %v733 = vpop.permute.xlu0 %732
    %734 = vrot.lane.b32.xlu0 %v234, 45
    %v735 = vpop.permute.xlu0 %734
    %736 = vrot.lane.b32.xlu0 %v235, 45
    %v737 = vpop.permute.xlu0 %736
    %738 = vrot.lane.b32.xlu0 %v236, 45
    %v739 = vpop.permute.xlu0 %738
    %vm740 = vcmp.lt.s32.totalorder %v246, 45
    %v741 = vsel %vm740, %v737, %v739
    %v742 = vsel %vm740, %v735, %v737
    %v743 = vsel %vm740, %v733, %v735
    %v744 = vsel %vm740, %v739, %v733
    %s745 = scalar_lea.vmem [#allocation5], 640
    %v746 = vld [vmem:[%s745] sm:$0xff]
    %v747 = vld [vmem:[%s745 + $0x8] sm:$0xff]
    %v748 = vld [vmem:[%s745 + $0x10] sm:$0xff]
    %v749 = vld [vmem:[%s745 + $0x18] sm:$0xff]
    %v750 = vmul.f32 %v744, %v746
    %v751 = vmul.f32 %v743, %v747
    %v752 = vmul.f32 %v742, %v748
    %v753 = vmul.f32 %v741, %v749
    %v754 = vadd.f32 %v728, %v750
    %v755 = vadd.f32 %v729, %v751
    %v756 = vadd.f32 %v730, %v752
    %v757 = vadd.f32 %v731, %v753
    %758 = vrot.lane.b32.xlu0 %v233, 3
    %v759 = vpop.permute.xlu0 %758
    %760 = vrot.lane.b32.xlu0 %v234, 3
    %v761 = vpop.permute.xlu0 %760
    %762 = vrot.lane.b32.xlu0 %v235, 3
    %v763 = vpop.permute.xlu0 %762
    %764 = vrot.lane.b32.xlu0 %v236, 3
    %v765 = vpop.permute.xlu0 %764
    %vm766 = vcmp.lt.s32.totalorder %v246, 3
    %v767 = vsel %vm766, %v763, %v765
    %v768 = vsel %vm766, %v761, %v763
    %v769 = vsel %vm766, %v759, %v761
    %v770 = vsel %vm766, %v765, %v759
    %s771 = scalar_lea.vmem [#allocation5], 672
    %v772 = vld [vmem:[%s771] sm:$0xff]
    %v773 = vld [vmem:[%s771 + $0x8] sm:$0xff]
    %v774 = vld [vmem:[%s771 + $0x10] sm:$0xff]
    %v775 = vld [vmem:[%s771 + $0x18] sm:$0xff]
    %v776 = vmul.f32 %v770, %v772
    %v777 = vmul.f32 %v769, %v773
    %v778 = vmul.f32 %v768, %v774
    %v779 = vmul.f32 %v767, %v775
    %v780 = vadd.f32 %v754, %v776
    %v781 = vadd.f32 %v755, %v777
    %v782 = vadd.f32 %v756, %v778
    %v783 = vadd.f32 %v757, %v779
    %s784 = scalar_lea.vmem [#allocation5], 704
    %v785 = vld [vmem:[%s784] sm:$0xff]
    %v786 = vld [vmem:[%s784 + $0x8] sm:$0xff]
    %v787 = vld [vmem:[%s784 + $0x10] sm:$0xff]
    %v788 = vld [vmem:[%s784 + $0x18] sm:$0xff]
    %v789 = vmul.f32 %v233, %v785
    %v790 = vmul.f32 %v234, %v786
    %v791 = vmul.f32 %v235, %v787
    %v792 = vmul.f32 %v236, %v788
    %v793 = vadd.f32 %v780, %v789
    %v794 = vadd.f32 %v781, %v790
    %v795 = vadd.f32 %v782, %v791
    %v796 = vadd.f32 %v783, %v792
    %797 = vrot.lane.b32.xlu0 %v233, 125
    %v798 = vpop.permute.xlu0 %797
    %799 = vrot.lane.b32.xlu0 %v234, 125
    %v800 = vpop.permute.xlu0 %799
    %801 = vrot.lane.b32.xlu0 %v235, 125
    %v802 = vpop.permute.xlu0 %801
    %803 = vrot.lane.b32.xlu0 %v236, 125
    %v804 = vpop.permute.xlu0 %803
    %vm805 = vcmp.lt.s32.totalorder %v246, 125
    %v806 = vsel %vm805, %v802, %v804
    %v807 = vsel %vm805, %v800, %v802
    %v808 = vsel %vm805, %v798, %v800
    %v809 = vsel %vm805, %v804, %v798
    %s810 = scalar_lea.vmem [#allocation5], 736
    %v811 = vld [vmem:[%s810] sm:$0xff]
    %v812 = vld [vmem:[%s810 + $0x8] sm:$0xff]
    %v813 = vld [vmem:[%s810 + $0x10] sm:$0xff]
    %v814 = vld [vmem:[%s810 + $0x18] sm:$0xff]
    %v815 = vmul.f32 %v808, %v811
    %v816 = vmul.f32 %v807, %v812
    %v817 = vmul.f32 %v806, %v813
    %v818 = vmul.f32 %v809, %v814
    %v819 = vadd.f32 %v793, %v815
    %v820 = vadd.f32 %v794, %v816
    %v821 = vadd.f32 %v795, %v817
    %v822 = vadd.f32 %v796, %v818
    %823 = vrot.lane.b32.xlu0 %v233, 83
    %v824 = vpop.permute.xlu0 %823
    %825 = vrot.lane.b32.xlu0 %v234, 83
    %v826 = vpop.permute.xlu0 %825
    %827 = vrot.lane.b32.xlu0 %v235, 83
    %v828 = vpop.permute.xlu0 %827
    %829 = vrot.lane.b32.xlu0 %v236, 83
    %v830 = vpop.permute.xlu0 %829
    %vm831 = vcmp.lt.s32.totalorder %v246, 83
    %v832 = vsel %vm831, %v828, %v830
    %v833 = vsel %vm831, %v826, %v828
    %v834 = vsel %vm831, %v824, %v826
    %v835 = vsel %vm831, %v830, %v824
    %s836 = scalar_lea.vmem [#allocation5], 768
    %v837 = vld [vmem:[%s836] sm:$0xff]
    %v838 = vld [vmem:[%s836 + $0x8] sm:$0xff]
    %v839 = vld [vmem:[%s836 + $0x10] sm:$0xff]
    %v840 = vld [vmem:[%s836 + $0x18] sm:$0xff]
    %v841 = vmul.f32 %v834, %v837
    %v842 = vmul.f32 %v833, %v838
    %v843 = vmul.f32 %v832, %v839
    %v844 = vmul.f32 %v835, %v840
    %v845 = vadd.f32 %v819, %v841
    %v846 = vadd.f32 %v820, %v842
    %v847 = vadd.f32 %v821, %v843
    %v848 = vadd.f32 %v822, %v844
    %849 = vrot.lane.b32.xlu0 %v233, 80
    %v850 = vpop.permute.xlu0 %849
    %851 = vrot.lane.b32.xlu0 %v234, 80
    %v852 = vpop.permute.xlu0 %851
    %853 = vrot.lane.b32.xlu0 %v235, 80
    %v854 = vpop.permute.xlu0 %853
    %855 = vrot.lane.b32.xlu0 %v236, 80
    %v856 = vpop.permute.xlu0 %855
    %vm857 = vcmp.lt.s32.totalorder %v246, 80
    %v858 = vsel %vm857, %v854, %v856
    %v859 = vsel %vm857, %v852, %v854
    %v860 = vsel %vm857, %v850, %v852
    %v861 = vsel %vm857, %v856, %v850
    %s862 = scalar_lea.vmem [#allocation5], 800
    %v863 = vld [vmem:[%s862] sm:$0xff]
    %v864 = vld [vmem:[%s862 + $0x8] sm:$0xff]
    %v865 = vld [vmem:[%s862 + $0x10] sm:$0xff]
    %v866 = vld [vmem:[%s862 + $0x18] sm:$0xff]
    %v867 = vmul.f32 %v860, %v863
    %v868 = vmul.f32 %v859, %v864
    %v869 = vmul.f32 %v858, %v865
    %v870 = vmul.f32 %v861, %v866
    %v871 = vadd.f32 %v845, %v867
    %v872 = vadd.f32 %v846, %v868
    %v873 = vadd.f32 %v847, %v869
    %v874 = vadd.f32 %v848, %v870
    %875 = vrot.lane.b32.xlu0 %v233, 77
    %v876 = vpop.permute.xlu0 %875
    %877 = vrot.lane.b32.xlu0 %v234, 77
    %v878 = vpop.permute.xlu0 %877
    %879 = vrot.lane.b32.xlu0 %v235, 77
    %v880 = vpop.permute.xlu0 %879
    %881 = vrot.lane.b32.xlu0 %v236, 77
    %v882 = vpop.permute.xlu0 %881
    %vm883 = vcmp.lt.s32.totalorder %v246, 77
    %v884 = vsel %vm883, %v880, %v882
    %v885 = vsel %vm883, %v878, %v880
    %v886 = vsel %vm883, %v876, %v878
    %v887 = vsel %vm883, %v882, %v876
    %s888 = scalar_lea.vmem [#allocation5], 832
    %v889 = vld [vmem:[%s888] sm:$0xff]
    %v890 = vld [vmem:[%s888 + $0x8] sm:$0xff]
    %v891 = vld [vmem:[%s888 + $0x10] sm:$0xff]
    %v892 = vld [vmem:[%s888 + $0x18] sm:$0xff]
    %v893 = vmul.f32 %v886, %v889
    %v894 = vmul.f32 %v885, %v890
    %v895 = vmul.f32 %v884, %v891
    %v896 = vmul.f32 %v887, %v892
    %v897 = vadd.f32 %v871, %v893
    %v898 = vadd.f32 %v872, %v894
    %v899 = vadd.f32 %v873, %v895
    %v900 = vadd.f32 %v874, %v896
    %901 = vrot.lane.b32.xlu0 %v233, 68
    %v902 = vpop.permute.xlu0 %901
    %903 = vrot.lane.b32.xlu0 %v234, 68
    %v904 = vpop.permute.xlu0 %903
    %905 = vrot.lane.b32.xlu0 %v235, 68
    %v906 = vpop.permute.xlu0 %905
    %907 = vrot.lane.b32.xlu0 %v236, 68
    %v908 = vpop.permute.xlu0 %907
    %vm909 = vcmp.lt.s32.totalorder %v246, 68
    %v910 = vsel %vm909, %v906, %v908
    %v911 = vsel %vm909, %v904, %v906
    %v912 = vsel %vm909, %v902, %v904
    %v913 = vsel %vm909, %v908, %v902
    %s914 = scalar_lea.vmem [#allocation5], 864
    %v915 = vld [vmem:[%s914] sm:$0xff]
    %v916 = vld [vmem:[%s914 + $0x8] sm:$0xff]
    %v917 = vld [vmem:[%s914 + $0x10] sm:$0xff]
    %v918 = vld [vmem:[%s914 + $0x18] sm:$0xff]
    %v919 = vmul.f32 %v913, %v915
    %v920 = vmul.f32 %v912, %v916
    %v921 = vmul.f32 %v911, %v917
    %v922 = vmul.f32 %v910, %v918
    %v923 = vadd.f32 %v919, 0.0
    %v924 = vadd.f32 %v920, 0.0
    %v925 = vadd.f32 %v921, 0.0
    %v926 = vadd.f32 %v922, 0.0
    %927 = vrot.lane.b32.xlu0 %v233, 64
    %v928 = vpop.permute.xlu0 %927
    %929 = vrot.lane.b32.xlu0 %v234, 64
    %v930 = vpop.permute.xlu0 %929
    %931 = vrot.lane.b32.xlu0 %v235, 64
    %v932 = vpop.permute.xlu0 %931
    %933 = vrot.lane.b32.xlu0 %v236, 64
    %v934 = vpop.permute.xlu0 %933
    %vm935 = vcmp.lt.s32.totalorder %v246, 64
    %v936 = vsel %vm935, %v932, %v934
    %v937 = vsel %vm935, %v930, %v932
    %v938 = vsel %vm935, %v928, %v930
    %v939 = vsel %vm935, %v934, %v928
    %s940 = scalar_lea.vmem [#allocation5], 896
    %v941 = vld [vmem:[%s940] sm:$0xff]
    %v942 = vld [vmem:[%s940 + $0x8] sm:$0xff]
    %v943 = vld [vmem:[%s940 + $0x10] sm:$0xff]
    %v944 = vld [vmem:[%s940 + $0x18] sm:$0xff]
    %v945 = vmul.f32 %v939, %v941
    %v946 = vmul.f32 %v938, %v942
    %v947 = vmul.f32 %v937, %v943
    %v948 = vmul.f32 %v936, %v944
    %v949 = vadd.f32 %v923, %v945
    %v950 = vadd.f32 %v924, %v946
    %v951 = vadd.f32 %v925, %v947
    %v952 = vadd.f32 %v926, %v948
    %953 = vrot.lane.b32.xlu0 %v233, 60
    %v954 = vpop.permute.xlu0 %953
    %955 = vrot.lane.b32.xlu0 %v234, 60
    %v956 = vpop.permute.xlu0 %955
    %957 = vrot.lane.b32.xlu0 %v235, 60
    %v958 = vpop.permute.xlu0 %957
    %959 = vrot.lane.b32.xlu0 %v236, 60
    %v960 = vpop.permute.xlu0 %959
    %vm961 = vcmp.lt.s32.totalorder %v246, 60
    %v962 = vsel %vm961, %v958, %v960
    %v963 = vsel %vm961, %v956, %v958
    %v964 = vsel %vm961, %v954, %v956
    %v965 = vsel %vm961, %v960, %v954
    %s966 = scalar_lea.vmem [#allocation5], 928
    %v967 = vld [vmem:[%s966] sm:$0xff]
    %v968 = vld [vmem:[%s966 + $0x8] sm:$0xff]
    %v969 = vld [vmem:[%s966 + $0x10] sm:$0xff]
    %v970 = vld [vmem:[%s966 + $0x18] sm:$0xff]
    %v971 = vmul.f32 %v965, %v967
    %v972 = vmul.f32 %v964, %v968
    %v973 = vmul.f32 %v963, %v969
    %v974 = vmul.f32 %v962, %v970
    %v975 = vadd.f32 %v949, %v971
    %v976 = vadd.f32 %v950, %v972
    %v977 = vadd.f32 %v951, %v973
    %v978 = vadd.f32 %v952, %v974
    %979 = vrot.lane.b32.xlu0 %v233, 4
    %v980 = vpop.permute.xlu0 %979
    %981 = vrot.lane.b32.xlu0 %v234, 4
    %v982 = vpop.permute.xlu0 %981
    %983 = vrot.lane.b32.xlu0 %v235, 4
    %v984 = vpop.permute.xlu0 %983
    %985 = vrot.lane.b32.xlu0 %v236, 4
    %v986 = vpop.permute.xlu0 %985
    %vm987 = vcmp.lt.s32.totalorder %v246, 4
    %v988 = vsel %vm987, %v984, %v986
    %v989 = vsel %vm987, %v982, %v984
    %v990 = vsel %vm987, %v980, %v982
    %v991 = vsel %vm987, %v986, %v980
    %s992 = scalar_lea.vmem [#allocation5], 960
    %v993 = vld [vmem:[%s992] sm:$0xff]
    %v994 = vld [vmem:[%s992 + $0x8] sm:$0xff]
    %v995 = vld [vmem:[%s992 + $0x10] sm:$0xff]
    %v996 = vld [vmem:[%s992 + $0x18] sm:$0xff]
    %v997 = vmul.f32 %v991, %v993
    %v998 = vmul.f32 %v990, %v994
    %v999 = vmul.f32 %v989, %v995
    %v1000 = vmul.f32 %v988, %v996
    %v1001 = vadd.f32 %v975, %v997
    %v1002 = vadd.f32 %v976, %v998
    %v1003 = vadd.f32 %v977, %v999
    %v1004 = vadd.f32 %v978, %v1000
    %s1005 = scalar_lea.vmem [#allocation5], 992
    %v1006 = vld [vmem:[%s1005] sm:$0xff]
    %v1007 = vld [vmem:[%s1005 + $0x8] sm:$0xff]
    %v1008 = vld [vmem:[%s1005 + $0x10] sm:$0xff]
    %v1009 = vld [vmem:[%s1005 + $0x18] sm:$0xff]
    %v1010 = vmul.f32 %v233, %v1006
    %v1011 = vmul.f32 %v234, %v1007
    %v1012 = vmul.f32 %v235, %v1008
    %v1013 = vmul.f32 %v236, %v1009
    %v1014 = vadd.f32 %v1001, %v1010
    %v1015 = vadd.f32 %v1002, %v1011
    %v1016 = vadd.f32 %v1003, %v1012
    %v1017 = vadd.f32 %v1004, %v1013
    %1018 = vrot.lane.b32.xlu0 %v233, 124
    %v1019 = vpop.permute.xlu0 %1018
    %1020 = vrot.lane.b32.xlu0 %v234, 124
    %v1021 = vpop.permute.xlu0 %1020
    %1022 = vrot.lane.b32.xlu0 %v235, 124
    %v1023 = vpop.permute.xlu0 %1022
    %1024 = vrot.lane.b32.xlu0 %v236, 124
    %v1025 = vpop.permute.xlu0 %1024
    %vm1026 = vcmp.lt.s32.totalorder %v246, 124
    %v1027 = vsel %vm1026, %v1023, %v1025
    %v1028 = vsel %vm1026, %v1021, %v1023
    %v1029 = vsel %vm1026, %v1019, %v1021
    %v1030 = vsel %vm1026, %v1025, %v1019
    %s1031 = scalar_lea.vmem [#allocation5], 1024
    %v1032 = vld [vmem:[%s1031] sm:$0xff]
    %v1033 = vld [vmem:[%s1031 + $0x8] sm:$0xff]
    %v1034 = vld [vmem:[%s1031 + $0x10] sm:$0xff]
    %v1035 = vld [vmem:[%s1031 + $0x18] sm:$0xff]
    %v1036 = vmul.f32 %v1029, %v1032
    %v1037 = vmul.f32 %v1028, %v1033
    %v1038 = vmul.f32 %v1027, %v1034
    %v1039 = vmul.f32 %v1030, %v1035
    %v1040 = vadd.f32 %v1014, %v1036
    %v1041 = vadd.f32 %v1015, %v1037
    %v1042 = vadd.f32 %v1016, %v1038
    %v1043 = vadd.f32 %v1017, %v1039
    %s1044 = scalar_lea.vmem [#allocation5], 1056
    %v1045 = vld [vmem:[%s1044] sm:$0xff]
    %v1046 = vld [vmem:[%s1044 + $0x8] sm:$0xff]
    %v1047 = vld [vmem:[%s1044 + $0x10] sm:$0xff]
    %v1048 = vld [vmem:[%s1044 + $0x18] sm:$0xff]
    %v1049 = vmul.f32 %v912, %v1045
    %v1050 = vmul.f32 %v911, %v1046
    %v1051 = vmul.f32 %v910, %v1047
    %v1052 = vmul.f32 %v913, %v1048
    %v1053 = vadd.f32 %v1040, %v1049
    %v1054 = vadd.f32 %v1041, %v1050
    %v1055 = vadd.f32 %v1042, %v1051
    %v1056 = vadd.f32 %v1043, %v1052
    %s1057 = scalar_lea.vmem [#allocation5], 1088
    %v1058 = vld [vmem:[%s1057] sm:$0xff]
    %v1059 = vld [vmem:[%s1057 + $0x8] sm:$0xff]
    %v1060 = vld [vmem:[%s1057 + $0x10] sm:$0xff]
    %v1061 = vld [vmem:[%s1057 + $0x18] sm:$0xff]
    %v1062 = vmul.f32 %v938, %v1058
    %v1063 = vmul.f32 %v937, %v1059
    %v1064 = vmul.f32 %v936, %v1060
    %v1065 = vmul.f32 %v939, %v1061
    %v1066 = vadd.f32 %v1053, %v1062
    %v1067 = vadd.f32 %v1054, %v1063
    %v1068 = vadd.f32 %v1055, %v1064
    %v1069 = vadd.f32 %v1056, %v1065
    %s1070 = scalar_lea.vmem [#allocation5], 1120
    %v1071 = vld [vmem:[%s1070] sm:$0xff]
    %v1072 = vld [vmem:[%s1070 + $0x8] sm:$0xff]
    %v1073 = vld [vmem:[%s1070 + $0x10] sm:$0xff]
    %v1074 = vld [vmem:[%s1070 + $0x18] sm:$0xff]
    %v1075 = vmul.f32 %v964, %v1071
    %v1076 = vmul.f32 %v963, %v1072
    %v1077 = vmul.f32 %v962, %v1073
    %v1078 = vmul.f32 %v965, %v1074
    %v1079 = vadd.f32 %v1066, %v1075
    %v1080 = vadd.f32 %v1067, %v1076
    %v1081 = vadd.f32 %v1068, %v1077
    %v1082 = vadd.f32 %v1069, %v1078
    %v1083 = vld [vmem:[%s4] sm:$0xff]
    %v1084 = vld [vmem:[%s4 + $0x8] sm:$0xff]
    %v1085 = vld [vmem:[%s4 + $0x10] sm:$0xff]
    %v1086 = vld [vmem:[%s4 + $0x18] sm:$0xff]
    %1088 = vset.pattern.permute.xlu0 0
    %1089 = vperm.xlu0 %1088, %v1083
    %v1090 = vpop.permute.xlu0 %1089
    %1093 = vset.pattern.permute.xlu0 0
    %1094 = vperm.xlu0 %1093, %v1084
    %v1095 = vpop.permute.xlu0 %1094
    %1098 = vset.pattern.permute.xlu0 0
    %1099 = vperm.xlu0 %1098, %v1085
    %v1100 = vpop.permute.xlu0 %1099
    %1103 = vset.pattern.permute.xlu0 0
    %1104 = vperm.xlu0 %1103, %v1086
    %v1105 = vpop.permute.xlu0 %1104
    %v1107 = vadd.f32 %v455, %v1090
    %v1108 = vadd.f32 %v456, %v1090
    %v1109 = vadd.f32 %v457, %v1090
    %v1110 = vadd.f32 %v458, %v1090
    %v1111 = vadd.f32 %v676, %v1095
    %v1112 = vadd.f32 %v677, %v1095
    %v1113 = vadd.f32 %v678, %v1095
    %v1114 = vadd.f32 %v679, %v1095
    %v1115 = vadd.f32 %v897, %v1100
    %v1116 = vadd.f32 %v898, %v1100
    %v1117 = vadd.f32 %v899, %v1100
    %v1118 = vadd.f32 %v900, %v1100
    %v1119 = vadd.f32 %v1079, %v1105
    %v1120 = vadd.f32 %v1080, %v1105
    %v1121 = vadd.f32 %v1081, %v1105
    %v1122 = vadd.f32 %v1082, %v1105
    %vm1123 = vcmp.gt.f32.partialorder %v1107, 0.0
    %vm1124 = vcmp.gt.f32.partialorder %v1108, 0.0
    %vm1125 = vcmp.gt.f32.partialorder %v1109, 0.0
    %vm1126 = vcmp.gt.f32.partialorder %v1110, 0.0
    %vm1127 = vcmp.gt.f32.partialorder %v1111, 0.0
    %vm1128 = vcmp.gt.f32.partialorder %v1112, 0.0
    %vm1129 = vcmp.gt.f32.partialorder %v1113, 0.0
    %vm1130 = vcmp.gt.f32.partialorder %v1114, 0.0
    %vm1131 = vcmp.gt.f32.partialorder %v1115, 0.0
    %vm1132 = vcmp.gt.f32.partialorder %v1116, 0.0
    %vm1133 = vcmp.gt.f32.partialorder %v1117, 0.0
    %vm1134 = vcmp.gt.f32.partialorder %v1118, 0.0
    %vm1135 = vcmp.gt.f32.partialorder %v1119, 0.0
    %vm1136 = vcmp.gt.f32.partialorder %v1120, 0.0
    %vm1137 = vcmp.gt.f32.partialorder %v1121, 0.0
    %vm1138 = vcmp.gt.f32.partialorder %v1122, 0.0
    %1139 = vset.pattern.permute.xlu0 1
    %1140 = vperm.xlu0 %1139, %v1083
    %v1141 = vpop.permute.xlu0 %1140
    %1143 = vset.pattern.permute.xlu0 1
    %1144 = vperm.xlu0 %1143, %v1084
    %v1145 = vpop.permute.xlu0 %1144
    %1147 = vset.pattern.permute.xlu0 1
    %1148 = vperm.xlu0 %1147, %v1085
    %v1149 = vpop.permute.xlu0 %1148
    %1151 = vset.pattern.permute.xlu0 1
    %1152 = vperm.xlu0 %1151, %v1086
    %v1153 = vpop.permute.xlu0 %1152
    %v1155 = vmul.f32 %v1141, %v1107
    %v1156 = vmul.f32 %v1141, %v1108
    %v1157 = vmul.f32 %v1141, %v1109
    %v1158 = vmul.f32 %v1141, %v1110
    %v1159 = vmul.f32 %v1145, %v1111
    %v1160 = vmul.f32 %v1145, %v1112
    %v1161 = vmul.f32 %v1145, %v1113
    %v1162 = vmul.f32 %v1145, %v1114
    %v1163 = vmul.f32 %v1149, %v1115
    %v1164 = vmul.f32 %v1149, %v1116
    %v1165 = vmul.f32 %v1149, %v1117
    %v1166 = vmul.f32 %v1149, %v1118
    %v1167 = vmul.f32 %v1153, %v1119
    %v1168 = vmul.f32 %v1153, %v1120
    %v1169 = vmul.f32 %v1153, %v1121
    %v1170 = vmul.f32 %v1153, %v1122
    %v1171 = vsel %vm1123, %v1107, %v1155
    %v1172 = vsel %vm1124, %v1108, %v1156
    %v1173 = vsel %vm1125, %v1109, %v1157
    %v1174 = vsel %vm1126, %v1110, %v1158
    %v1175 = vsel %vm1127, %v1111, %v1159
    %v1176 = vsel %vm1128, %v1112, %v1160
    %v1177 = vsel %vm1129, %v1113, %v1161
    %v1178 = vsel %vm1130, %v1114, %v1162
    %v1179 = vsel %vm1131, %v1115, %v1163
    %v1180 = vsel %vm1132, %v1116, %v1164
    %v1181 = vsel %vm1133, %v1117, %v1165
    %v1182 = vsel %vm1134, %v1118, %v1166
    %v1183 = vsel %vm1135, %v1119, %v1167
    %v1184 = vsel %vm1136, %v1120, %v1168
    %v1185 = vsel %vm1137, %v1121, %v1169
    %v1186 = vsel %vm1138, %v1122, %v1170
    %v1187 = vld [vmem:[%s5] sm:$0x1]
    %v1188 = vadd.f32 %v1171, %v1172
    %1189 = vadd.xlane.f32.xlu0 %v1188
    %v1190 = vpop.xlane.xlu0 %1189
    %v1191 = vadd.f32 %v1175, %v1176
    %1192 = vadd.xlane.f32.xlu0 %v1191
    %v1193 = vpop.xlane.xlu0 %1192
    %v1194 = vadd.f32 %v1179, %v1180
    %1195 = vadd.xlane.f32.xlu0 %v1194
    %v1196 = vpop.xlane.xlu0 %1195
    %v1197 = vadd.f32 %v1183, %v1184
    %1198 = vadd.xlane.f32.xlu0 %v1197
    %v1199 = vpop.xlane.xlu0 %1198
    %v1200 = vmul.f32 %v1190, 0.00390625
    %v1201 = vmul.f32 %v1193, 0.00390625
    %v1202 = vmul.f32 %v1196, 0.00390625
    %v1203 = vmul.f32 %v1199, 0.00390625
    %v1204 = vmul.f32 %v1083, %v1200
    %v1205 = vmul.f32 %v1084, %v1201
    %v1206 = vmul.f32 %v1085, %v1202
    %v1207 = vmul.f32 %v1086, %v1203
    %vm1208 = vcmask 31760
    %v1209 = vsel %vm1208, %v1204, 0.0
    %v1210 = vsel %vm1208, %v1205, 0.0
    %v1211 = vadd.f32 %v1209, %v1210
    %v1212 = vsel %vm1208, %v1206, 0.0
    %v1213 = vadd.f32 %v1211, %v1212
    %v1214 = vsel %vm1208, %v1207, 0.0
    %v1215 = vadd.f32 %v1213, %v1214
    %v1216 = vrot.slane %v1215, 4
    %v1217 = vadd.f32 %v1215, %v1216
    %v1218 = vrot.slane %v1217, 2
    %v1219 = vadd.f32 %v1217, %v1218
    %v1220 = vrot.slane %v1219, 1
    %v1221 = vadd.f32 %v1219, %v1220
    %v1223 = vlaneseq
    %v1224 = vshrl.u32 %v1223, 7
    %v1225 = vsub.s32 0, %v1224
    %v1226 = vrot.slane %v1187, %v1225
    %1227 = vrot.lane.b32.xlu0 %v1226, 2
    %v1228 = vpop.permute.xlu0 %1227
    %v1230 = vadd.f32 %v1221, %v1228
    %v1231 = vmax.f32 %v1230, 0.0
    %v1232 = vlaneseq
    %v1233 = vshrl.u32 %v1232, 7
    %v1234 = vsub.s32 0, %v1233
    %v1235 = vrot.slane %v1231, %v1234
    %1237 = vrot.lane.b32.xlu0 %v1235, 2
    %v1238 = vpop.permute.xlu0 %1237
    %v1240 = vmul.f32 %v1083, %v1238
    %v1241 = vmul.f32 %v1084, %v1238
    %v1242 = vmul.f32 %v1085, %v1238
    %v1243 = vmul.f32 %v1086, %v1238
    %1248 = vrot.lane.b32.xlu0 %v1240, 124
    %v1249 = vpop.permute.xlu0 %1248
    %1250 = vrot.lane.b32.xlu0 %v1241, 124
    %v1251 = vpop.permute.xlu0 %1250
    %1252 = vrot.lane.b32.xlu0 %v1242, 124
    %v1253 = vpop.permute.xlu0 %1252
    %1254 = vrot.lane.b32.xlu0 %v1243, 124
    %v1255 = vpop.permute.xlu0 %1254
    %vm1260 = vcmask 15360
    %v1261 = vsel %vm1260, %v1249, 0.0
    %1262 = vadd.xlane.f32.xlu0 %v1261
    %v1263 = vpop.xlane.xlu0 %1262
    %v1264 = vsel %vm1260, %v1251, 0.0
    %1265 = vadd.xlane.f32.xlu0 %v1264
    %v1266 = vpop.xlane.xlu0 %1265
    %v1267 = vsel %vm1260, %v1253, 0.0
    %1268 = vadd.xlane.f32.xlu0 %v1267
    %v1269 = vpop.xlane.xlu0 %1268
    %v1270 = vsel %vm1260, %v1255, 0.0
    %1271 = vadd.xlane.f32.xlu0 %v1270
    %v1272 = vpop.xlane.xlu0 %1271
    %v1273 = vadd.f32 %v1263, %v1083
    %v1274 = vadd.f32 %v1266, %v1084
    %v1275 = vadd.f32 %v1269, %v1085
    %v1276 = vadd.f32 %v1272, %v1086
    %v1277 = vxor.u32 %v1273, 2147483648
    %v1278 = vxor.u32 %v1274, 2147483648
    %v1279 = vxor.u32 %v1275, 2147483648
    %v1280 = vxor.u32 %v1276, 2147483648
    %v1281 = vmul.f32 %v1277, 1.442695
    %v1282 = vpow.pop %v1281
    %v1283 = vmul.f32 %v1278, 1.442695
    %v1284 = vpow.pop %v1283
    %v1285 = vmul.f32 %v1279, 1.442695
    %v1286 = vpow.pop %v1285
    %v1287 = vmul.f32 %v1280, 1.442695
    %v1288 = vpow.pop %v1287
    %v1289 = vadd.f32 %v1282, 1.0
    %v1290 = vadd.f32 %v1284, 1.0
    %v1291 = vadd.f32 %v1286, 1.0
    %v1292 = vadd.f32 %v1288, 1.0
    %v1293 = vrcp.pop %v1289
    %v1294 = vmul.f32 1.0, %v1293
    %v1295 = vrcp.pop %v1290
    %v1296 = vmul.f32 1.0, %v1295
    %v1297 = vrcp.pop %v1291
    %v1298 = vmul.f32 1.0, %v1297
    %v1299 = vrcp.pop %v1292
    %v1300 = vmul.f32 1.0, %v1299
    %v1301 = vld [vmem:[#allocation2] sm:$0xff]
    %v1302 = vld [vmem:[#allocation2 + $0x8] sm:$0xff]
    %v1303 = vld [vmem:[#allocation2 + $0x20] sm:$0xff]
    %v1304 = vld [vmem:[#allocation2 + $0x28] sm:$0xff]
    %v1305 = vld [vmem:[#allocation2 + $0x40] sm:$0xff]
    %v1306 = vld [vmem:[#allocation2 + $0x48] sm:$0xff]
    %v1307 = vld [vmem:[#allocation2 + $0x60] sm:$0xff]
    %v1308 = vld [vmem:[#allocation2 + $0x68] sm:$0xff]
    %1310 = vset.pattern.permute.xlu0 6
    %1311 = vperm.xlu0 %1310, %v1294
    %v1312 = vpop.permute.xlu0 %1311
    %1315 = vset.pattern.permute.xlu0 6
    %1316 = vperm.xlu0 %1315, %v1296
    %v1317 = vpop.permute.xlu0 %1316
    %1320 = vset.pattern.permute.xlu0 6
    %1321 = vperm.xlu0 %1320, %v1298
    %v1322 = vpop.permute.xlu0 %1321
    %1325 = vset.pattern.permute.xlu0 6
    %1326 = vperm.xlu0 %1325, %v1300
    %v1327 = vpop.permute.xlu0 %1326
    %v1329 = vmul.f32 %v1171, %v1312
    %v1330 = vmul.f32 %v1172, %v1312
    %v1331 = vmul.f32 %v1175, %v1317
    %v1332 = vmul.f32 %v1176, %v1317
    %v1333 = vmul.f32 %v1179, %v1322
    %v1334 = vmul.f32 %v1180, %v1322
    %v1335 = vmul.f32 %v1183, %v1327
    %v1336 = vmul.f32 %v1184, %v1327
    %v1337 = vadd.f32 %v1301, %v1329
    %v1338 = vadd.f32 %v1302, %v1330
    %v1339 = vadd.f32 %v1303, %v1331
    %v1340 = vadd.f32 %v1304, %v1332
    %v1341 = vadd.f32 %v1305, %v1333
    %v1342 = vadd.f32 %v1306, %v1334
    %v1343 = vadd.f32 %v1307, %v1335
    %v1344 = vadd.f32 %v1308, %v1336
    %1345 = vst [vmem:[#allocation7] sm:$0xff] %v1337
    %1346 = vst [vmem:[#allocation7 + $0x8] sm:$0xff] %v1338
    %1347 = vst [vmem:[#allocation7 + $0x20] sm:$0xff] %v1339
    %1348 = vst [vmem:[#allocation7 + $0x28] sm:$0xff] %v1340
    %1349 = vst [vmem:[#allocation7 + $0x40] sm:$0xff] %v1341
    %1350 = vst [vmem:[#allocation7 + $0x48] sm:$0xff] %v1342
    %1351 = vst [vmem:[#allocation7 + $0x60] sm:$0xff] %v1343
    %1352 = vst [vmem:[#allocation7 + $0x68] sm:$0xff] %v1344
    %v1353 = vadd.f32 %v1173, %v1174
    %1354 = vadd.xlane.f32.xlu0 %v1353
    %v1355 = vpop.xlane.xlu0 %1354
    %v1356 = vadd.f32 %v1177, %v1178
    %1357 = vadd.xlane.f32.xlu0 %v1356
    %v1358 = vpop.xlane.xlu0 %1357
    %v1359 = vadd.f32 %v1181, %v1182
    %1360 = vadd.xlane.f32.xlu0 %v1359
    %v1361 = vpop.xlane.xlu0 %1360
    %v1362 = vadd.f32 %v1185, %v1186
    %1363 = vadd.xlane.f32.xlu0 %v1362
    %v1364 = vpop.xlane.xlu0 %1363
    %v1365 = vmul.f32 %v1355, 0.00390625
    %v1366 = vmul.f32 %v1358, 0.00390625
    %v1367 = vmul.f32 %v1361, 0.00390625
    %v1368 = vmul.f32 %v1364, 0.00390625
    %v1369 = vmul.f32 %v1083, %v1365
    %v1370 = vmul.f32 %v1084, %v1366
    %v1371 = vmul.f32 %v1085, %v1367
    %v1372 = vmul.f32 %v1086, %v1368
    %v1373 = vsel %vm1208, %v1369, 0.0
    %v1374 = vsel %vm1208, %v1370, 0.0
    %v1375 = vadd.f32 %v1373, %v1374
    %v1376 = vsel %vm1208, %v1371, 0.0
    %v1377 = vadd.f32 %v1375, %v1376
    %v1378 = vsel %vm1208, %v1372, 0.0
    %v1379 = vadd.f32 %v1377, %v1378
    %v1380 = vrot.slane %v1379, 4
    %v1381 = vadd.f32 %v1379, %v1380
    %v1382 = vrot.slane %v1381, 2
    %v1383 = vadd.f32 %v1381, %v1382
    %v1384 = vrot.slane %v1383, 1
    %v1385 = vadd.f32 %v1383, %v1384
    %v1386 = vadd.f32 %v1385, %v1228
    %v1387 = vmax.f32 %v1386, 0.0
    %v1388 = vlaneseq
    %v1389 = vshrl.u32 %v1388, 7
    %v1390 = vsub.s32 0, %v1389
    %v1391 = vrot.slane %v1387, %v1390
    %1393 = vrot.lane.b32.xlu0 %v1391, 2
    %v1394 = vpop.permute.xlu0 %1393
    %v1396 = vmul.f32 %v1083, %v1394
    %v1397 = vmul.f32 %v1084, %v1394
    %v1398 = vmul.f32 %v1085, %v1394
    %v1399 = vmul.f32 %v1086, %v1394
    %1404 = vrot.lane.b32.xlu0 %v1396, 124
    %v1405 = vpop.permute.xlu0 %1404
    %1406 = vrot.lane.b32.xlu0 %v1397, 124
    %v1407 = vpop.permute.xlu0 %1406
    %1408 = vrot.lane.b32.xlu0 %v1398, 124
    %v1409 = vpop.permute.xlu0 %1408
    %1410 = vrot.lane.b32.xlu0 %v1399, 124
    %v1411 = vpop.permute.xlu0 %1410
    %v1416 = vsel %vm1260, %v1405, 0.0
    %1417 = vadd.xlane.f32.xlu0 %v1416
    %v1418 = vpop.xlane.xlu0 %1417
    %v1419 = vsel %vm1260, %v1407, 0.0
    %1420 = vadd.xlane.f32.xlu0 %v1419
    %v1421 = vpop.xlane.xlu0 %1420
    %v1422 = vsel %vm1260, %v1409, 0.0
    %1423 = vadd.xlane.f32.xlu0 %v1422
    %v1424 = vpop.xlane.xlu0 %1423
    %v1425 = vsel %vm1260, %v1411, 0.0
    %1426 = vadd.xlane.f32.xlu0 %v1425
    %v1427 = vpop.xlane.xlu0 %1426
    %v1428 = vadd.f32 %v1418, %v1083
    %v1429 = vadd.f32 %v1421, %v1084
    %v1430 = vadd.f32 %v1424, %v1085
    %v1431 = vadd.f32 %v1427, %v1086
    %v1432 = vxor.u32 %v1428, 2147483648
    %v1433 = vxor.u32 %v1429, 2147483648
    %v1434 = vxor.u32 %v1430, 2147483648
    %v1435 = vxor.u32 %v1431, 2147483648
    %v1436 = vmul.f32 %v1432, 1.442695
    %v1437 = vpow.pop %v1436
    %v1438 = vmul.f32 %v1433, 1.442695
    %v1439 = vpow.pop %v1438
    %v1440 = vmul.f32 %v1434, 1.442695
    %v1441 = vpow.pop %v1440
    %v1442 = vmul.f32 %v1435, 1.442695
    %v1443 = vpow.pop %v1442
    %v1444 = vadd.f32 %v1437, 1.0
    %v1445 = vadd.f32 %v1439, 1.0
    %v1446 = vadd.f32 %v1441, 1.0
    %v1447 = vadd.f32 %v1443, 1.0
    %v1448 = vrcp.pop %v1444
    %v1449 = vmul.f32 1.0, %v1448
    %v1450 = vrcp.pop %v1445
    %v1451 = vmul.f32 1.0, %v1450
    %v1452 = vrcp.pop %v1446
    %v1453 = vmul.f32 1.0, %v1452
    %v1454 = vrcp.pop %v1447
    %v1455 = vmul.f32 1.0, %v1454
    %v1456 = vld [vmem:[#allocation2 + $0x10] sm:$0xff]
    %v1457 = vld [vmem:[#allocation2 + $0x18] sm:$0xff]
    %v1458 = vld [vmem:[#allocation2 + $0x30] sm:$0xff]
    %v1459 = vld [vmem:[#allocation2 + $0x38] sm:$0xff]
    %v1460 = vld [vmem:[#allocation2 + $0x50] sm:$0xff]
    %v1461 = vld [vmem:[#allocation2 + $0x58] sm:$0xff]
    %v1462 = vld [vmem:[#allocation2 + $0x70] sm:$0xff]
    %v1463 = vld [vmem:[#allocation2 + $0x78] sm:$0xff]
    %1465 = vset.pattern.permute.xlu0 6
    %1466 = vperm.xlu0 %1465, %v1449
    %v1467 = vpop.permute.xlu0 %1466
    %1470 = vset.pattern.permute.xlu0 6
    %1471 = vperm.xlu0 %1470, %v1451
    %v1472 = vpop.permute.xlu0 %1471
    %1475 = vset.pattern.permute.xlu0 6
    %1476 = vperm.xlu0 %1475, %v1453
    %v1477 = vpop.permute.xlu0 %1476
    %1480 = vset.pattern.permute.xlu0 6
    %1481 = vperm.xlu0 %1480, %v1455
    %v1482 = vpop.permute.xlu0 %1481
    %v1484 = vmul.f32 %v1173, %v1467
    %v1485 = vmul.f32 %v1174, %v1467
    %v1486 = vmul.f32 %v1177, %v1472
    %v1487 = vmul.f32 %v1178, %v1472
    %v1488 = vmul.f32 %v1181, %v1477
    %v1489 = vmul.f32 %v1182, %v1477
    %v1490 = vmul.f32 %v1185, %v1482
    %v1491 = vmul.f32 %v1186, %v1482
    %v1492 = vadd.f32 %v1456, %v1484
    %v1493 = vadd.f32 %v1457, %v1485
    %v1494 = vadd.f32 %v1458, %v1486
    %v1495 = vadd.f32 %v1459, %v1487
    %v1496 = vadd.f32 %v1460, %v1488
    %v1497 = vadd.f32 %v1461, %v1489
    %v1498 = vadd.f32 %v1462, %v1490
    %v1499 = vadd.f32 %v1463, %v1491
    %1500 = vst [vmem:[#allocation7 + $0x10] sm:$0xff] %v1492
    %1501 = vst [vmem:[#allocation7 + $0x18] sm:$0xff] %v1493
    %1502 = vst [vmem:[#allocation7 + $0x30] sm:$0xff] %v1494
    %1503 = vst [vmem:[#allocation7 + $0x38] sm:$0xff] %v1495
    %1504 = vst [vmem:[#allocation7 + $0x50] sm:$0xff] %v1496
    %1505 = vst [vmem:[#allocation7 + $0x58] sm:$0xff] %v1497
    %1506 = vst [vmem:[#allocation7 + $0x70] sm:$0xff] %v1498
    %1507 = vst [vmem:[#allocation7 + $0x78] sm:$0xff] %v1499
    // Predicated region
    $region34: #{tpu_custom_call.1} parent=1 // pred_check
      _
    $region35: #{tpu_custom_call.1} parent=1 // pred_check_branch
      %1509 = sbr.rel (0) target = $region37
    $region36: #{tpu_custom_call.1} parent=1 // pred_region
      %s1511 = ssub.s32 2048, 2048
      %1512 = vsyncadd [#allocation4], %s1511
      %s1513 = sshll.u32 [#allocation7], 4
      %s1514 = int_to_ptr.vmem [resolvable:$true] %s1513
      %1519 = dma.vmem_to_hbm [thread:$0]  %s1514, 2048, %s6, [#allocation4], 512, 512, 32
    $region37: #{tpu_custom_call.1} parent=1 // pred_fallthru
      _
    // Predicated region
    $region38: #{tpu_custom_call.1} parent=1 // pred_check
      _
    $region39: #{tpu_custom_call.1} parent=1 // pred_check_branch
      %1521 = sbr.rel (0) target = $region41
    $region40: #{tpu_custom_call.1} parent=1 // pred_region
      %1522 = dma.done [#allocation4], 2048
    $region41: #{tpu_custom_call.1} parent=1 // pred_fallthru
      _
    %1523 = vsyncpa [#allocation3], 1
    %1524 = vsyncpa [#allocation6], 1
    %1525 = vsyncpa [#allocation4], 1

</llo_original>
